<compile_context>
chip_gen: v5e
topology: v5e:2x2
jax: 0.10.0
libtpu: 0.0.40
codegen_flags: <defaults>
</compile_context>

<pallas_src>
import functools
import math

import jax
import jax.numpy as jnp
from jax.experimental import pallas as pl
from jax.experimental.pallas import tpu as pltpu


_VMEM_LIMIT = 64 * 1024 * 1024  # explicit scoped-VMEM cap; also fits v7x (64 MiB)


# ----------------------------------------------------------------------------
# In-kernel helpers
# ----------------------------------------------------------------------------
def _layernorm_f32(xf, a, b, eps):
    # Matches model.py LayerNorm: x.std(-1) is unbiased (ddof=1), eps added to std.
    d = xf.shape[-1]
    mean = jnp.mean(xf, axis=-1, keepdims=True)
    diff = xf - mean
    var = jnp.sum(diff * diff, axis=-1, keepdims=True) / jnp.float32(d - 1)
    return a * diff / (jnp.sqrt(var) + eps) + b


def _softmax_rows(s):
    s = s - jnp.max(s, axis=-1, keepdims=True)
    p = jnp.exp(s)
    return p * pl.reciprocal(jnp.sum(p, axis=-1, keepdims=True), approx=True)


def _attn_heads(q_all, k_all, v_all, bias, wo, H):
    """Per-head attention with the output projection fused & accumulated.

    q_all:(T,D) already scaled by 1/sqrt(dk) (folded into weights),
    k_all/v_all:(Tk,D), bias:(T,Tk) additive, wo:(D,D).  Returns fp32 (T,D).
    """
    T, D = q_all.shape
    dk = D // H
    acc = jnp.zeros((T, D), jnp.float32)
    for h in range(H):                                   # static unroll over heads
        q = q_all[:, h * dk:(h + 1) * dk]
        k = k_all[:, h * dk:(h + 1) * dk]
        v = v_all[:, h * dk:(h + 1) * dk]
        s = jax.lax.dot_general(q, k, (((1,), (1,)), ((), ())),
                                preferred_element_type=jnp.float32) + bias
        p = _softmax_rows(s)
        pv = jnp.dot(p, v, preferred_element_type=jnp.float32)
        # o-projection fused & accumulated per head -> lane-dense (T, D) output
        acc = acc + jnp.dot(pv.astype(wo.dtype), wo[h * dk:(h + 1) * dk, :],
                            preferred_element_type=jnp.float32)
    return acc


# ----------------------------------------------------------------------------
# Pallas kernels
# ----------------------------------------------------------------------------
def decoder_layer_kernel(
        x_ref, mem_ref, tgt_bias_ref, src_bias_ref,
        ln0a_ref, ln0b_ref, wqkv_ref, bqkv_ref, wso_ref, bso_ref,
        ln1a_ref, ln1b_ref, wq_ref, bq_ref, wkv_ref, bkv_ref, wxo_ref, bxo_ref,
        ln2a_ref, ln2b_ref, w1_ref, b1_ref, w2_ref, b2_ref,
        o_ref, *, H, eps):
    # refs (batch squeezed): x (T,D), memory (Ts,D), biases (T,T)/(T,Ts),
    # wqkv (D,3D), wkv (D,2D), o-proj weights (D,D), FF (D,d_ff)/(d_ff,D).
    xf = x_ref[...].astype(jnp.float32)
    T, D = xf.shape

    # ---- sublayer 0: pre-LN self-attention + residual -----------------------
    xn = _layernorm_f32(xf, ln0a_ref[...].astype(jnp.float32),
                        ln0b_ref[...].astype(jnp.float32), eps)
    # Fused Q|K|V projection: single MXU pass, lane-dense N=3D output.
    qkv = jnp.dot(xn.astype(wqkv_ref.dtype), wqkv_ref[...],
                  preferred_element_type=jnp.float32) + bqkv_ref[...].astype(jnp.float32)
    acc = _attn_heads(qkv[:, :D], qkv[:, D:2 * D], qkv[:, 2 * D:],
                      tgt_bias_ref[...].astype(jnp.float32), wso_ref[...], H)
    xf = xf + acc + bso_ref[...].astype(jnp.float32)

    # ---- sublayer 1: pre-LN source attention + residual ---------------------
    xn = _layernorm_f32(xf, ln1a_ref[...].astype(jnp.float32),
                        ln1b_ref[...].astype(jnp.float32), eps)
    q_all = jnp.dot(xn.astype(wq_ref.dtype), wq_ref[...],
                    preferred_element_type=jnp.float32) + bq_ref[...].astype(jnp.float32)
    mf = mem_ref[...]                                    # memory is NOT normed
    kv = jnp.dot(mf.astype(wkv_ref.dtype), wkv_ref[...],
                 preferred_element_type=jnp.float32) + bkv_ref[...].astype(jnp.float32)
    acc = _attn_heads(q_all, kv[:, :D], kv[:, D:],
                      src_bias_ref[...].astype(jnp.float32), wxo_ref[...], H)
    xf = xf + acc + bxo_ref[...].astype(jnp.float32)

    # ---- sublayer 2: pre-LN feed-forward + residual --------------------------
    xn = _layernorm_f32(xf, ln2a_ref[...].astype(jnp.float32),
                        ln2b_ref[...].astype(jnp.float32), eps)
    hid = jnp.dot(xn.astype(w1_ref.dtype), w1_ref[...],
                  preferred_element_type=jnp.float32) + b1_ref[...].astype(jnp.float32)
    hid = jnp.maximum(hid, 0.0)
    y = jnp.dot(hid.astype(w2_ref.dtype), w2_ref[...],
                preferred_element_type=jnp.float32) + b2_ref[...].astype(jnp.float32)
    o_ref[...] = (xf + y).astype(o_ref.dtype)


def layernorm_kernel(x_ref, a_ref, b_ref, o_ref, *, eps):
    xf = x_ref[...].astype(jnp.float32)
    out = _layernorm_f32(xf, a_ref[...].astype(jnp.float32),
                         b_ref[...].astype(jnp.float32), eps)
    o_ref[...] = out.astype(o_ref.dtype)


# ----------------------------------------------------------------------------
# Pallas wrappers
# ----------------------------------------------------------------------------
def _row_tile(M, target=512):
    """Largest row tile <= target that divides M (multiple of 8), else full M."""
    if M <= target:
        return M
    for tm in (512, 256, 128, 64, 32, 16, 8):
        if tm <= target and M % tm == 0:
            return tm
    return M


def decoder_layer_block(x, memory, tgt_bias, src_bias, p, H, eps=1e-6):
    B, T, D = x.shape
    Ts = memory.shape[1]
    d_ff = p["ff_w1"].shape[1]

    def full(shape):
        return pl.BlockSpec(shape, lambda b, _s=len(shape): (0,) * _s)

    return pl.pallas_call(
        functools.partial(decoder_layer_kernel, H=H, eps=eps),
        out_shape=jax.ShapeDtypeStruct((B, T, D), x.dtype),
        grid=(B,),
        in_specs=[
            pl.BlockSpec((None, T, D), lambda b: (b, 0, 0)),     # x
            pl.BlockSpec((None, Ts, D), lambda b: (b, 0, 0)),    # memory
            pl.BlockSpec((None, T, T), lambda b: (b, 0, 0)),     # tgt additive bias
            pl.BlockSpec((None, T, Ts), lambda b: (b, 0, 0)),    # src additive bias
            full((1, D)), full((1, D)),                          # ln0 a,b
            full((D, 3 * D)), full((1, 3 * D)),                  # fused QKV w,b
            full((D, D)), full((1, D)),                          # self o-proj w,b
            full((1, D)), full((1, D)),                          # ln1 a,b
            full((D, D)), full((1, D)),                          # src q w,b (pre-scaled)
            full((D, 2 * D)), full((1, 2 * D)),                  # fused KV w,b
            full((D, D)), full((1, D)),                          # src o-proj w,b
            full((1, D)), full((1, D)),                          # ln2 a,b
            full((D, d_ff)), full((1, d_ff)),                    # ff1 w,b
            full((d_ff, D)), full((1, D)),                       # ff2 w,b
        ],
        out_specs=pl.BlockSpec((None, T, D), lambda b: (b, 0, 0)),
        compiler_params=pltpu.CompilerParams(
            dimension_semantics=("parallel",), vmem_limit_bytes=_VMEM_LIMIT),
    )(x, memory, tgt_bias, src_bias,
      p["ln0_a"], p["ln0_b"], p["qkv_w"], p["qkv_b"], p["self_o_w"], p["self_o_b"],
      p["ln1_a"], p["ln1_b"], p["src_q_w_s"], p["src_q_b_s"], p["kv_w"], p["kv_b"],
      p["src_o_w"], p["src_o_b"],
      p["ln2_a"], p["ln2_b"], p["ff_w1"], p["ff_b1"], p["ff_w2"], p["ff_b2"])


def layernorm(x2d, a, b, eps=1e-6):
    M, D = x2d.shape
    TM = _row_tile(M)
    return pl.pallas_call(
        functools.partial(layernorm_kernel, eps=eps),
        out_shape=jax.ShapeDtypeStruct((M, D), x2d.dtype),
        grid=(M // TM,),
        in_specs=[
            pl.BlockSpec((TM, D), lambda i: (i, 0)),
            pl.BlockSpec((1, D), lambda i: (0, 0)),
            pl.BlockSpec((1, D), lambda i: (0, 0)),
        ],
        out_specs=pl.BlockSpec((TM, D), lambda i: (i, 0)),
        compiler_params=pltpu.CompilerParams(
            dimension_semantics=("parallel",), vmem_limit_bytes=_VMEM_LIMIT),
    )(x2d, a, b)


# ----------------------------------------------------------------------------
# Decoder forward (1 pallas_call per layer + final LN)
# ----------------------------------------------------------------------------
def prepare_layer_params(p, H):
    """Fuse QKV / KV weights and fold the 1/sqrt(dk) scale into Q (once, outside)."""
    D = p["self_q_w"].shape[0]
    scale = jnp.float32(1.0 / math.sqrt(D // H))
    q = dict(p)
    q["qkv_w"] = jnp.concatenate(
        [p["self_q_w"] * scale, p["self_k_w"], p["self_v_w"]], axis=1)
    q["qkv_b"] = jnp.concatenate(
        [p["self_q_b"] * scale, p["self_k_b"], p["self_v_b"]], axis=1)
    q["src_q_w_s"] = p["src_q_w"] * scale
    q["src_q_b_s"] = p["src_q_b"] * scale
    q["kv_w"] = jnp.concatenate([p["src_k_w"], p["src_v_w"]], axis=1)
    q["kv_b"] = jnp.concatenate([p["src_k_b"], p["src_v_b"]], axis=1)
    return q


def decoder_forward(x, memory, src_mask, tgt_mask, layer_params, final_a, final_b, H):
    B, T, D = x.shape
    Ts = memory.shape[1]
    # Masks -> additive fp32 biases (0 / -1e9), built once, reused by all layers.
    # (A causal decoder never has a fully-masked row, so additive bias matches
    #  the reference masked_fill semantics.)
    tgt_bias = jnp.where(jnp.broadcast_to(tgt_mask, (B, T, T)) == 0,
                         jnp.float32(-1e9), jnp.float32(0.0))
    src_bias = jnp.where(jnp.broadcast_to(src_mask, (B, T, Ts)) == 0,
                         jnp.float32(-1e9), jnp.float32(0.0))
    params = [prepare_layer_params(p, H) for p in layer_params]
    for p in params:
        x = decoder_layer_block(x, memory, tgt_bias, src_bias, p, H)
    return layernorm(x.reshape(B * T, D), final_a, final_b).reshape(B, T, D)


# ----------------------------------------------------------------------------
# Pure-JAX reference (for correctness check)
# ----------------------------------------------------------------------------
def ref_layernorm(x, a, b, eps=1e-6):
    mean = x.mean(-1, keepdims=True)
    var = ((x - mean) ** 2).sum(-1, keepdims=True) / (x.shape[-1] - 1)
    return a * (x - mean) / (jnp.sqrt(var) + eps) + b


def ref_mha(xq, xkv, mask_full, wq, bq, wk, bk, wv, bv, wo, bo, H):
    B, Tq, D = xq.shape
    Tk = xkv.shape[1]
    dk = D // H
    q = (xq @ wq + bq).reshape(B, Tq, H, dk).transpose(0, 2, 1, 3)
    k = (xkv @ wk + bk).reshape(B, Tk, H, dk).transpose(0, 2, 1, 3)
    v = (xkv @ wv + bv).reshape(B, Tk, H, dk).transpose(0, 2, 1, 3)
    scores = jnp.einsum("bhqd,bhkd->bhqk", q, k) / jnp.sqrt(jnp.float32(dk))
    scores = jnp.where(mask_full[:, None, :, :] == 0, -1e9, scores)
    p = jax.nn.softmax(scores, axis=-1)
    o = jnp.einsum("bhqk,bhkd->bhqd", p, v).transpose(0, 2, 1, 3).reshape(B, Tq, D)
    return o @ wo + bo


def ref_decoder(x, memory, src_mask, tgt_mask, layer_params, final_a, final_b, H):
    B, T, D = x.shape
    Ts = memory.shape[1]
    tgt_mask_f = jnp.broadcast_to(tgt_mask, (B, T, T)).astype(jnp.float32)
    src_mask_f = jnp.broadcast_to(src_mask, (B, T, Ts)).astype(jnp.float32)
    for p in layer_params:
        xn = ref_layernorm(x, p["ln0_a"], p["ln0_b"])
        x = x + ref_mha(xn, xn, tgt_mask_f,
                        p["self_q_w"], p["self_q_b"], p["self_k_w"], p["self_k_b"],
                        p["self_v_w"], p["self_v_b"], p["self_o_w"], p["self_o_b"], H)
        xn = ref_layernorm(x, p["ln1_a"], p["ln1_b"])
        x = x + ref_mha(xn, memory, src_mask_f,
                        p["src_q_w"], p["src_q_b"], p["src_k_w"], p["src_k_b"],
                        p["src_v_w"], p["src_v_b"], p["src_o_w"], p["src_o_b"], H)
        xn = ref_layernorm(x, p["ln2_a"], p["ln2_b"])
        x = x + jnp.maximum(xn @ p["ff_w1"] + p["ff_b1"], 0.0) @ p["ff_w2"] + p["ff_b2"]
    return ref_layernorm(x, final_a, final_b)


# ----------------------------------------------------------------------------
# Deterministic parameter init
# ----------------------------------------------------------------------------
def init_layer_params(key, D, d_ff):
    def lin(k, fin, fout):
        k1, k2 = jax.random.split(k)
        w = jax.random.normal(k1, (fin, fout), jnp.float32) * 0.05
        b = jax.random.normal(k2, (1, fout), jnp.float32) * 0.05
        return w, b

    keys = jax.random.split(key, 10)
    p = {}
    for prefix, base in (("self", 0), ("src", 4)):
        for j, nm in enumerate(("q", "k", "v", "o")):
            w, b = lin(keys[base + j], D, D)
            p[f"{prefix}_{nm}_w"], p[f"{prefix}_{nm}_b"] = w, b
    p["ff_w1"], p["ff_b1"] = lin(keys[8], D, d_ff)
    p["ff_w2"], p["ff_b2"] = lin(keys[9], d_ff, D)
    for i in range(3):
        p[f"ln{i}_a"] = jnp.ones((1, D), jnp.float32)
        p[f"ln{i}_b"] = jnp.zeros((1, D), jnp.float32)
    return p


if __name__ == "__main__":
    B, T, Ts, D, H, d_ff, N = 2, 8, 8, 32, 4, 64, 2

    root = jax.random.PRNGKey(0)
    kx, km, kp = jax.random.split(root, 3)
    x = jax.random.normal(kx, (B, T, D), jnp.float32)
    memory = jax.random.normal(km, (B, Ts, D), jnp.float32)

    # masks: causal target mask, all-ones source mask (1 = attend, 0 = masked)
    tgt_mask = jnp.tril(jnp.ones((1, T, T), jnp.float32))
    src_mask = jnp.ones((B, 1, Ts), jnp.float32)

    # `clones` deep-copies the same layer -> all N layers share identical init.
    base = init_layer_params(kp, D, d_ff)
    layer_params = [base for _ in range(N)]
    final_a = jnp.ones((1, D), jnp.float32)
    final_b = jnp.zeros((1, D), jnp.float32)

    out = decoder_forward(x, memory, src_mask, tgt_mask,
                          layer_params, final_a, final_b, H)
    out = jax.block_until_ready(out)

    ref = ref_decoder(x, memory, src_mask, tgt_mask,
                      layer_params, final_a.reshape(D), final_b.reshape(D), H)
    assert out.shape == (B, T, D)
    # Tolerance covers the EUP approximate reciprocal in the softmax denominator.
    assert bool(jnp.allclose(out, ref, atol=5e-3, rtol=5e-3)), "mismatch vs reference"

    print("KERNEL_OK")
</pallas_src>

<mosaic_0001>
module attributes {stable_mosaic.version = 11 : i64} {
  func.func @decoder_layer_kernel(%arg0: i32, %arg1: memref<1x8x32xf32, #tpu.memory_space<vmem>>, %arg2: memref<1x8x32xf32, #tpu.memory_space<vmem>>, %arg3: memref<1x8x8xf32, #tpu.memory_space<vmem>>, %arg4: memref<1x8x8xf32, #tpu.memory_space<vmem>>, %arg5: memref<1x32xf32, #tpu.memory_space<vmem>>, %arg6: memref<1x32xf32, #tpu.memory_space<vmem>>, %arg7: memref<32x96xf32, #tpu.memory_space<vmem>>, %arg8: memref<1x96xf32, #tpu.memory_space<vmem>>, %arg9: memref<32x32xf32, #tpu.memory_space<vmem>>, %arg10: memref<1x32xf32, #tpu.memory_space<vmem>>, %arg11: memref<1x32xf32, #tpu.memory_space<vmem>>, %arg12: memref<1x32xf32, #tpu.memory_space<vmem>>, %arg13: memref<32x32xf32, #tpu.memory_space<vmem>>, %arg14: memref<1x32xf32, #tpu.memory_space<vmem>>, %arg15: memref<32x64xf32, #tpu.memory_space<vmem>>, %arg16: memref<1x64xf32, #tpu.memory_space<vmem>>, %arg17: memref<32x32xf32, #tpu.memory_space<vmem>>, %arg18: memref<1x32xf32, #tpu.memory_space<vmem>>, %arg19: memref<1x32xf32, #tpu.memory_space<vmem>>, %arg20: memref<1x32xf32, #tpu.memory_space<vmem>>, %arg21: memref<32x64xf32, #tpu.memory_space<vmem>>, %arg22: memref<1x64xf32, #tpu.memory_space<vmem>>, %arg23: memref<64x32xf32, #tpu.memory_space<vmem>>, %arg24: memref<1x32xf32, #tpu.memory_space<vmem>>, %arg25: memref<1x8x32xf32, #tpu.memory_space<vmem>>) attributes {dimension_semantics = [#tpu.dimension_semantics<parallel>], iteration_bounds = array<i64: 2>, scalar_prefetch = 0 : i64, scratch_operands = 0 : i64, tpu.core_type = #tpu.core_type<tc>, window_params = [{transform_indices = @transform_0, window_bounds = array<i64: 1, 8, 32>}, {transform_indices = @transform_1, window_bounds = array<i64: 1, 8, 32>}, {transform_indices = @transform_2, window_bounds = array<i64: 1, 8, 8>}, {transform_indices = @transform_3, window_bounds = array<i64: 1, 8, 8>}, {pipeline_mode = #tpu.pipeline_mode<synchronous>, transform_indices = @transform_4, window_bounds = array<i64: 1, 32>}, {pipeline_mode = #tpu.pipeline_mode<synchronous>, transform_indices = @transform_5, window_bounds = array<i64: 1, 32>}, {pipeline_mode = #tpu.pipeline_mode<synchronous>, transform_indices = @transform_6, window_bounds = array<i64: 32, 96>}, {pipeline_mode = #tpu.pipeline_mode<synchronous>, transform_indices = @transform_7, window_bounds = array<i64: 1, 96>}, {pipeline_mode = #tpu.pipeline_mode<synchronous>, transform_indices = @transform_8, window_bounds = array<i64: 32, 32>}, {pipeline_mode = #tpu.pipeline_mode<synchronous>, transform_indices = @transform_9, window_bounds = array<i64: 1, 32>}, {pipeline_mode = #tpu.pipeline_mode<synchronous>, transform_indices = @transform_10, window_bounds = array<i64: 1, 32>}, {pipeline_mode = #tpu.pipeline_mode<synchronous>, transform_indices = @transform_11, window_bounds = array<i64: 1, 32>}, {pipeline_mode = #tpu.pipeline_mode<synchronous>, transform_indices = @transform_12, window_bounds = array<i64: 32, 32>}, {pipeline_mode = #tpu.pipeline_mode<synchronous>, transform_indices = @transform_13, window_bounds = array<i64: 1, 32>}, {pipeline_mode = #tpu.pipeline_mode<synchronous>, transform_indices = @transform_14, window_bounds = array<i64: 32, 64>}, {pipeline_mode = #tpu.pipeline_mode<synchronous>, transform_indices = @transform_15, window_bounds = array<i64: 1, 64>}, {pipeline_mode = #tpu.pipeline_mode<synchronous>, transform_indices = @transform_16, window_bounds = array<i64: 32, 32>}, {pipeline_mode = #tpu.pipeline_mode<synchronous>, transform_indices = @transform_17, window_bounds = array<i64: 1, 32>}, {pipeline_mode = #tpu.pipeline_mode<synchronous>, transform_indices = @transform_18, window_bounds = array<i64: 1, 32>}, {pipeline_mode = #tpu.pipeline_mode<synchronous>, transform_indices = @transform_19, window_bounds = array<i64: 1, 32>}, {pipeline_mode = #tpu.pipeline_mode<synchronous>, transform_indices = @transform_20, window_bounds = array<i64: 32, 64>}, {pipeline_mode = #tpu.pipeline_mode<synchronous>, transform_indices = @transform_21, window_bounds = array<i64: 1, 64>}, {pipeline_mode = #tpu.pipeline_mode<synchronous>, transform_indices = @transform_22, window_bounds = array<i64: 64, 32>}, {pipeline_mode = #tpu.pipeline_mode<synchronous>, transform_indices = @transform_23, window_bounds = array<i64: 1, 32>}, {transform_indices = @transform_24, window_bounds = array<i64: 1, 8, 32>}]} {
    %c0 = arith.constant 0 : index
    %c0_0 = arith.constant 0 : index
    %c0_1 = arith.constant 0 : index
    %0 = vector.load %arg1[%c0, %c0_0, %c0_1] : memref<1x8x32xf32, #tpu.memory_space<vmem>>, vector<1x8x32xf32>
    %1 = vector.shape_cast %0 : vector<1x8x32xf32> to vector<8x32xf32>
    %c0_2 = arith.constant 0 : index
    %c0_3 = arith.constant 0 : index
    %2 = vector.load %arg5[%c0_2, %c0_3] : memref<1x32xf32, #tpu.memory_space<vmem>>, vector<1x32xf32>
    %c0_4 = arith.constant 0 : index
    %c0_5 = arith.constant 0 : index
    %3 = vector.load %arg6[%c0_4, %c0_5] : memref<1x32xf32, #tpu.memory_space<vmem>>, vector<1x32xf32>
    %cst = arith.constant dense<0.000000e+00> : vector<8xf32>
    %4 = vector.multi_reduction <add>, %1, %cst [1] : vector<8x32xf32> to vector<8xf32>
    %5 = vector.shape_cast %4 : vector<8xf32> to vector<8x1xf32>
    %cst_6 = arith.constant 3.200000e+01 : f32
    %6 = vector.broadcast %cst_6 : f32 to vector<8x1xf32>
    %7 = arith.divf %5, %6 : vector<8x1xf32>
    %8 = vector.broadcast %7 : vector<8x1xf32> to vector<8x32xf32>
    %9 = arith.subf %1, %8 : vector<8x32xf32>
    %10 = arith.mulf %9, %9 : vector<8x32xf32>
    %cst_7 = arith.constant dense<0.000000e+00> : vector<8xf32>
    %11 = vector.multi_reduction <add>, %10, %cst_7 [1] : vector<8x32xf32> to vector<8xf32>
    %12 = vector.shape_cast %11 : vector<8xf32> to vector<8x1xf32>
    %cst_8 = arith.constant 3.100000e+01 : f32
    %13 = vector.broadcast %cst_8 : f32 to vector<8x1xf32>
    %14 = arith.divf %12, %13 : vector<8x1xf32>
    %15 = vector.broadcast %2 : vector<1x32xf32> to vector<8x32xf32>
    %16 = arith.mulf %15, %9 : vector<8x32xf32>
    %17 = math.sqrt %14 : vector<8x1xf32>
    %cst_9 = arith.constant 9.99999997E-7 : f32
    %18 = vector.broadcast %cst_9 : f32 to vector<8x1xf32>
    %19 = arith.addf %17, %18 : vector<8x1xf32>
    %20 = vector.broadcast %19 : vector<8x1xf32> to vector<8x32xf32>
    %21 = arith.divf %16, %20 : vector<8x32xf32>
    %22 = vector.broadcast %3 : vector<1x32xf32> to vector<8x32xf32>
    %23 = arith.addf %21, %22 : vector<8x32xf32>
    %c0_10 = arith.constant 0 : index
    %c0_11 = arith.constant 0 : index
    %24 = vector.load %arg7[%c0_10, %c0_11] : memref<32x96xf32, #tpu.memory_space<vmem>>, vector<32x96xf32>
    %cst_12 = arith.constant dense<0.000000e+00> : vector<8x96xf32>
    %25 = tpu.matmul %23, %24, %cst_12 {dimension_numbers = #tpu.dot_dimension_numbers<[1], [0], [0], [1], [0, 0, 1, 1], [], []>} : vector<8x32xf32>, vector<32x96xf32>, vector<8x96xf32> -> vector<8x96xf32>
    %c0_13 = arith.constant 0 : index
    %c0_14 = arith.constant 0 : index
    %26 = vector.load %arg8[%c0_13, %c0_14] : memref<1x96xf32, #tpu.memory_space<vmem>>, vector<1x96xf32>
    %27 = vector.broadcast %26 : vector<1x96xf32> to vector<8x96xf32>
    %28 = arith.addf %25, %27 : vector<8x96xf32>
    %29 = vector.extract_strided_slice %28 {offsets = [0, 0], sizes = [8, 32], strides = [1, 1]} : vector<8x96xf32> to vector<8x32xf32>
    %30 = vector.extract_strided_slice %28 {offsets = [0, 32], sizes = [8, 32], strides = [1, 1]} : vector<8x96xf32> to vector<8x32xf32>
    %31 = vector.extract_strided_slice %28 {offsets = [0, 64], sizes = [8, 32], strides = [1, 1]} : vector<8x96xf32> to vector<8x32xf32>
    %c0_15 = arith.constant 0 : index
    %c0_16 = arith.constant 0 : index
    %c0_17 = arith.constant 0 : index
    %32 = vector.load %arg3[%c0_15, %c0_16, %c0_17] : memref<1x8x8xf32, #tpu.memory_space<vmem>>, vector<1x8x8xf32>
    %33 = vector.shape_cast %32 : vector<1x8x8xf32> to vector<8x8xf32>
    %c0_18 = arith.constant 0 : index
    %c0_19 = arith.constant 0 : index
    %34 = vector.load %arg9[%c0_18, %c0_19] : memref<32x32xf32, #tpu.memory_space<vmem>>, vector<32x32xf32>
    %cst_20 = arith.constant 0.000000e+00 : f32
    %35 = vector.broadcast %cst_20 : f32 to vector<8x32xf32>
    %36 = vector.extract_strided_slice %29 {offsets = [0, 0], sizes = [8, 8], strides = [1, 1]} : vector<8x32xf32> to vector<8x8xf32>
    %37 = vector.extract_strided_slice %30 {offsets = [0, 0], sizes = [8, 8], strides = [1, 1]} : vector<8x32xf32> to vector<8x8xf32>
    %38 = vector.extract_strided_slice %31 {offsets = [0, 0], sizes = [8, 8], strides = [1, 1]} : vector<8x32xf32> to vector<8x8xf32>
    %cst_21 = arith.constant dense<0.000000e+00> : vector<8x8xf32>
    %39 = tpu.matmul %36, %37, %cst_21 {dimension_numbers = #tpu.dot_dimension_numbers<[1], [1], [0], [0], [0, 0, 1, 0], [], []>} : vector<8x8xf32>, vector<8x8xf32>, vector<8x8xf32> -> vector<8x8xf32>
    %40 = arith.addf %39, %33 : vector<8x8xf32>
    %cst_22 = arith.constant dense<0xFF800000> : vector<8xf32>
    %41 = vector.multi_reduction <maximumf>, %40, %cst_22 [1] : vector<8x8xf32> to vector<8xf32>
    %42 = vector.shape_cast %41 : vector<8xf32> to vector<8x1xf32>
    %43 = vector.broadcast %42 : vector<8x1xf32> to vector<8x8xf32>
    %44 = arith.subf %40, %43 : vector<8x8xf32>
    %45 = math.exp %44 : vector<8x8xf32>
    %cst_23 = arith.constant dense<0.000000e+00> : vector<8xf32>
    %46 = vector.multi_reduction <add>, %45, %cst_23 [1] : vector<8x8xf32> to vector<8xf32>
    %47 = vector.shape_cast %46 : vector<8xf32> to vector<8x1xf32>
    %48 = tpu.reciprocal %47 {approx = true} : vector<8x1xf32> -> vector<8x1xf32>
    %49 = vector.broadcast %48 : vector<8x1xf32> to vector<8x8xf32>
    %50 = arith.mulf %45, %49 : vector<8x8xf32>
    %cst_24 = arith.constant dense<0.000000e+00> : vector<8x8xf32>
    %51 = tpu.matmul %50, %38, %cst_24 {dimension_numbers = #tpu.dot_dimension_numbers<[1], [0], [0], [1], [0, 0, 1, 1], [], []>} : vector<8x8xf32>, vector<8x8xf32>, vector<8x8xf32> -> vector<8x8xf32>
    %52 = vector.extract_strided_slice %34 {offsets = [0, 0], sizes = [8, 32], strides = [1, 1]} : vector<32x32xf32> to vector<8x32xf32>
    %cst_25 = arith.constant dense<0.000000e+00> : vector<8x32xf32>
    %53 = tpu.matmul %51, %52, %cst_25 {dimension_numbers = #tpu.dot_dimension_numbers<[1], [0], [0], [1], [0, 0, 1, 1], [], []>} : vector<8x8xf32>, vector<8x32xf32>, vector<8x32xf32> -> vector<8x32xf32>
    %54 = arith.addf %35, %53 : vector<8x32xf32>
    %55 = vector.extract_strided_slice %29 {offsets = [0, 8], sizes = [8, 8], strides = [1, 1]} : vector<8x32xf32> to vector<8x8xf32>
    %56 = vector.extract_strided_slice %30 {offsets = [0, 8], sizes = [8, 8], strides = [1, 1]} : vector<8x32xf32> to vector<8x8xf32>
    %57 = vector.extract_strided_slice %31 {offsets = [0, 8], sizes = [8, 8], strides = [1, 1]} : vector<8x32xf32> to vector<8x8xf32>
    %cst_26 = arith.constant dense<0.000000e+00> : vector<8x8xf32>
    %58 = tpu.matmul %55, %56, %cst_26 {dimension_numbers = #tpu.dot_dimension_numbers<[1], [1], [0], [0], [0, 0, 1, 0], [], []>} : vector<8x8xf32>, vector<8x8xf32>, vector<8x8xf32> -> vector<8x8xf32>
    %59 = arith.addf %58, %33 : vector<8x8xf32>
    %cst_27 = arith.constant dense<0xFF800000> : vector<8xf32>
    %60 = vector.multi_reduction <maximumf>, %59, %cst_27 [1] : vector<8x8xf32> to vector<8xf32>
    %61 = vector.shape_cast %60 : vector<8xf32> to vector<8x1xf32>
    %62 = vector.broadcast %61 : vector<8x1xf32> to vector<8x8xf32>
    %63 = arith.subf %59, %62 : vector<8x8xf32>
    %64 = math.exp %63 : vector<8x8xf32>
    %cst_28 = arith.constant dense<0.000000e+00> : vector<8xf32>
    %65 = vector.multi_reduction <add>, %64, %cst_28 [1] : vector<8x8xf32> to vector<8xf32>
    %66 = vector.shape_cast %65 : vector<8xf32> to vector<8x1xf32>
    %67 = tpu.reciprocal %66 {approx = true} : vector<8x1xf32> -> vector<8x1xf32>
    %68 = vector.broadcast %67 : vector<8x1xf32> to vector<8x8xf32>
    %69 = arith.mulf %64, %68 : vector<8x8xf32>
    %cst_29 = arith.constant dense<0.000000e+00> : vector<8x8xf32>
    %70 = tpu.matmul %69, %57, %cst_29 {dimension_numbers = #tpu.dot_dimension_numbers<[1], [0], [0], [1], [0, 0, 1, 1], [], []>} : vector<8x8xf32>, vector<8x8xf32>, vector<8x8xf32> -> vector<8x8xf32>
    %71 = vector.extract_strided_slice %34 {offsets = [8, 0], sizes = [8, 32], strides = [1, 1]} : vector<32x32xf32> to vector<8x32xf32>
    %cst_30 = arith.constant dense<0.000000e+00> : vector<8x32xf32>
    %72 = tpu.matmul %70, %71, %cst_30 {dimension_numbers = #tpu.dot_dimension_numbers<[1], [0], [0], [1], [0, 0, 1, 1], [], []>} : vector<8x8xf32>, vector<8x32xf32>, vector<8x32xf32> -> vector<8x32xf32>
    %73 = arith.addf %54, %72 : vector<8x32xf32>
    %74 = vector.extract_strided_slice %29 {offsets = [0, 16], sizes = [8, 8], strides = [1, 1]} : vector<8x32xf32> to vector<8x8xf32>
    %75 = vector.extract_strided_slice %30 {offsets = [0, 16], sizes = [8, 8], strides = [1, 1]} : vector<8x32xf32> to vector<8x8xf32>
    %76 = vector.extract_strided_slice %31 {offsets = [0, 16], sizes = [8, 8], strides = [1, 1]} : vector<8x32xf32> to vector<8x8xf32>
    %cst_31 = arith.constant dense<0.000000e+00> : vector<8x8xf32>
    %77 = tpu.matmul %74, %75, %cst_31 {dimension_numbers = #tpu.dot_dimension_numbers<[1], [1], [0], [0], [0, 0, 1, 0], [], []>} : vector<8x8xf32>, vector<8x8xf32>, vector<8x8xf32> -> vector<8x8xf32>
    %78 = arith.addf %77, %33 : vector<8x8xf32>
    %cst_32 = arith.constant dense<0xFF800000> : vector<8xf32>
    %79 = vector.multi_reduction <maximumf>, %78, %cst_32 [1] : vector<8x8xf32> to vector<8xf32>
    %80 = vector.shape_cast %79 : vector<8xf32> to vector<8x1xf32>
    %81 = vector.broadcast %80 : vector<8x1xf32> to vector<8x8xf32>
    %82 = arith.subf %78, %81 : vector<8x8xf32>
    %83 = math.exp %82 : vector<8x8xf32>
    %cst_33 = arith.constant dense<0.000000e+00> : vector<8xf32>
    %84 = vector.multi_reduction <add>, %83, %cst_33 [1] : vector<8x8xf32> to vector<8xf32>
    %85 = vector.shape_cast %84 : vector<8xf32> to vector<8x1xf32>
    %86 = tpu.reciprocal %85 {approx = true} : vector<8x1xf32> -> vector<8x1xf32>
    %87 = vector.broadcast %86 : vector<8x1xf32> to vector<8x8xf32>
    %88 = arith.mulf %83, %87 : vector<8x8xf32>
    %cst_34 = arith.constant dense<0.000000e+00> : vector<8x8xf32>
    %89 = tpu.matmul %88, %76, %cst_34 {dimension_numbers = #tpu.dot_dimension_numbers<[1], [0], [0], [1], [0, 0, 1, 1], [], []>} : vector<8x8xf32>, vector<8x8xf32>, vector<8x8xf32> -> vector<8x8xf32>
    %90 = vector.extract_strided_slice %34 {offsets = [16, 0], sizes = [8, 32], strides = [1, 1]} : vector<32x32xf32> to vector<8x32xf32>
    %cst_35 = arith.constant dense<0.000000e+00> : vector<8x32xf32>
    %91 = tpu.matmul %89, %90, %cst_35 {dimension_numbers = #tpu.dot_dimension_numbers<[1], [0], [0], [1], [0, 0, 1, 1], [], []>} : vector<8x8xf32>, vector<8x32xf32>, vector<8x32xf32> -> vector<8x32xf32>
    %92 = arith.addf %73, %91 : vector<8x32xf32>
    %93 = vector.extract_strided_slice %29 {offsets = [0, 24], sizes = [8, 8], strides = [1, 1]} : vector<8x32xf32> to vector<8x8xf32>
    %94 = vector.extract_strided_slice %30 {offsets = [0, 24], sizes = [8, 8], strides = [1, 1]} : vector<8x32xf32> to vector<8x8xf32>
    %95 = vector.extract_strided_slice %31 {offsets = [0, 24], sizes = [8, 8], strides = [1, 1]} : vector<8x32xf32> to vector<8x8xf32>
    %cst_36 = arith.constant dense<0.000000e+00> : vector<8x8xf32>
    %96 = tpu.matmul %93, %94, %cst_36 {dimension_numbers = #tpu.dot_dimension_numbers<[1], [1], [0], [0], [0, 0, 1, 0], [], []>} : vector<8x8xf32>, vector<8x8xf32>, vector<8x8xf32> -> vector<8x8xf32>
    %97 = arith.addf %96, %33 : vector<8x8xf32>
    %cst_37 = arith.constant dense<0xFF800000> : vector<8xf32>
    %98 = vector.multi_reduction <maximumf>, %97, %cst_37 [1] : vector<8x8xf32> to vector<8xf32>
    %99 = vector.shape_cast %98 : vector<8xf32> to vector<8x1xf32>
    %100 = vector.broadcast %99 : vector<8x1xf32> to vector<8x8xf32>
    %101 = arith.subf %97, %100 : vector<8x8xf32>
    %102 = math.exp %101 : vector<8x8xf32>
    %cst_38 = arith.constant dense<0.000000e+00> : vector<8xf32>
    %103 = vector.multi_reduction <add>, %102, %cst_38 [1] : vector<8x8xf32> to vector<8xf32>
    %104 = vector.shape_cast %103 : vector<8xf32> to vector<8x1xf32>
    %105 = tpu.reciprocal %104 {approx = true} : vector<8x1xf32> -> vector<8x1xf32>
    %106 = vector.broadcast %105 : vector<8x1xf32> to vector<8x8xf32>
    %107 = arith.mulf %102, %106 : vector<8x8xf32>
    %cst_39 = arith.constant dense<0.000000e+00> : vector<8x8xf32>
    %108 = tpu.matmul %107, %95, %cst_39 {dimension_numbers = #tpu.dot_dimension_numbers<[1], [0], [0], [1], [0, 0, 1, 1], [], []>} : vector<8x8xf32>, vector<8x8xf32>, vector<8x8xf32> -> vector<8x8xf32>
    %109 = vector.extract_strided_slice %34 {offsets = [24, 0], sizes = [8, 32], strides = [1, 1]} : vector<32x32xf32> to vector<8x32xf32>
    %cst_40 = arith.constant dense<0.000000e+00> : vector<8x32xf32>
    %110 = tpu.matmul %108, %109, %cst_40 {dimension_numbers = #tpu.dot_dimension_numbers<[1], [0], [0], [1], [0, 0, 1, 1], [], []>} : vector<8x8xf32>, vector<8x32xf32>, vector<8x32xf32> -> vector<8x32xf32>
    %111 = arith.addf %92, %110 : vector<8x32xf32>
    %112 = arith.addf %1, %111 : vector<8x32xf32>
    %c0_41 = arith.constant 0 : index
    %c0_42 = arith.constant 0 : index
    %113 = vector.load %arg10[%c0_41, %c0_42] : memref<1x32xf32, #tpu.memory_space<vmem>>, vector<1x32xf32>
    %114 = vector.broadcast %113 : vector<1x32xf32> to vector<8x32xf32>
    %115 = arith.addf %112, %114 : vector<8x32xf32>
    %c0_43 = arith.constant 0 : index
    %c0_44 = arith.constant 0 : index
    %116 = vector.load %arg11[%c0_43, %c0_44] : memref<1x32xf32, #tpu.memory_space<vmem>>, vector<1x32xf32>
    %c0_45 = arith.constant 0 : index
    %c0_46 = arith.constant 0 : index
    %117 = vector.load %arg12[%c0_45, %c0_46] : memref<1x32xf32, #tpu.memory_space<vmem>>, vector<1x32xf32>
    %cst_47 = arith.constant dense<0.000000e+00> : vector<8xf32>
    %118 = vector.multi_reduction <add>, %115, %cst_47 [1] : vector<8x32xf32> to vector<8xf32>
    %119 = vector.shape_cast %118 : vector<8xf32> to vector<8x1xf32>
    %cst_48 = arith.constant 3.200000e+01 : f32
    %120 = vector.broadcast %cst_48 : f32 to vector<8x1xf32>
    %121 = arith.divf %119, %120 : vector<8x1xf32>
    %122 = vector.broadcast %121 : vector<8x1xf32> to vector<8x32xf32>
    %123 = arith.subf %115, %122 : vector<8x32xf32>
    %124 = arith.mulf %123, %123 : vector<8x32xf32>
    %cst_49 = arith.constant dense<0.000000e+00> : vector<8xf32>
    %125 = vector.multi_reduction <add>, %124, %cst_49 [1] : vector<8x32xf32> to vector<8xf32>
    %126 = vector.shape_cast %125 : vector<8xf32> to vector<8x1xf32>
    %cst_50 = arith.constant 3.100000e+01 : f32
    %127 = vector.broadcast %cst_50 : f32 to vector<8x1xf32>
    %128 = arith.divf %126, %127 : vector<8x1xf32>
    %129 = vector.broadcast %116 : vector<1x32xf32> to vector<8x32xf32>
    %130 = arith.mulf %129, %123 : vector<8x32xf32>
    %131 = math.sqrt %128 : vector<8x1xf32>
    %cst_51 = arith.constant 9.99999997E-7 : f32
    %132 = vector.broadcast %cst_51 : f32 to vector<8x1xf32>
    %133 = arith.addf %131, %132 : vector<8x1xf32>
    %134 = vector.broadcast %133 : vector<8x1xf32> to vector<8x32xf32>
    %135 = arith.divf %130, %134 : vector<8x32xf32>
    %136 = vector.broadcast %117 : vector<1x32xf32> to vector<8x32xf32>
    %137 = arith.addf %135, %136 : vector<8x32xf32>
    %c0_52 = arith.constant 0 : index
    %c0_53 = arith.constant 0 : index
    %138 = vector.load %arg13[%c0_52, %c0_53] : memref<32x32xf32, #tpu.memory_space<vmem>>, vector<32x32xf32>
    %cst_54 = arith.constant dense<0.000000e+00> : vector<8x32xf32>
    %139 = tpu.matmul %137, %138, %cst_54 {dimension_numbers = #tpu.dot_dimension_numbers<[1], [0], [0], [1], [0, 0, 1, 1], [], []>} : vector<8x32xf32>, vector<32x32xf32>, vector<8x32xf32> -> vector<8x32xf32>
    %c0_55 = arith.constant 0 : index
    %c0_56 = arith.constant 0 : index
    %140 = vector.load %arg14[%c0_55, %c0_56] : memref<1x32xf32, #tpu.memory_space<vmem>>, vector<1x32xf32>
    %141 = vector.broadcast %140 : vector<1x32xf32> to vector<8x32xf32>
    %142 = arith.addf %139, %141 : vector<8x32xf32>
    %c0_57 = arith.constant 0 : index
    %c0_58 = arith.constant 0 : index
    %c0_59 = arith.constant 0 : index
    %143 = vector.load %arg2[%c0_57, %c0_58, %c0_59] : memref<1x8x32xf32, #tpu.memory_space<vmem>>, vector<1x8x32xf32>
    %144 = vector.shape_cast %143 : vector<1x8x32xf32> to vector<8x32xf32>
    %c0_60 = arith.constant 0 : index
    %c0_61 = arith.constant 0 : index
    %145 = vector.load %arg15[%c0_60, %c0_61] : memref<32x64xf32, #tpu.memory_space<vmem>>, vector<32x64xf32>
    %cst_62 = arith.constant dense<0.000000e+00> : vector<8x64xf32>
    %146 = tpu.matmul %144, %145, %cst_62 {dimension_numbers = #tpu.dot_dimension_numbers<[1], [0], [0], [1], [0, 0, 1, 1], [], []>} : vector<8x32xf32>, vector<32x64xf32>, vector<8x64xf32> -> vector<8x64xf32>
    %c0_63 = arith.constant 0 : index
    %c0_64 = arith.constant 0 : index
    %147 = vector.load %arg16[%c0_63, %c0_64] : memref<1x64xf32, #tpu.memory_space<vmem>>, vector<1x64xf32>
    %148 = vector.broadcast %147 : vector<1x64xf32> to vector<8x64xf32>
    %149 = arith.addf %146, %148 : vector<8x64xf32>
    %150 = vector.extract_strided_slice %149 {offsets = [0, 0], sizes = [8, 32], strides = [1, 1]} : vector<8x64xf32> to vector<8x32xf32>
    %151 = vector.extract_strided_slice %149 {offsets = [0, 32], sizes = [8, 32], strides = [1, 1]} : vector<8x64xf32> to vector<8x32xf32>
    %c0_65 = arith.constant 0 : index
    %c0_66 = arith.constant 0 : index
    %c0_67 = arith.constant 0 : index
    %152 = vector.load %arg4[%c0_65, %c0_66, %c0_67] : memref<1x8x8xf32, #tpu.memory_space<vmem>>, vector<1x8x8xf32>
    %153 = vector.shape_cast %152 : vector<1x8x8xf32> to vector<8x8xf32>
    %c0_68 = arith.constant 0 : index
    %c0_69 = arith.constant 0 : index
    %154 = vector.load %arg17[%c0_68, %c0_69] : memref<32x32xf32, #tpu.memory_space<vmem>>, vector<32x32xf32>
    %cst_70 = arith.constant 0.000000e+00 : f32
    %155 = vector.broadcast %cst_70 : f32 to vector<8x32xf32>
    %156 = vector.extract_strided_slice %142 {offsets = [0, 0], sizes = [8, 8], strides = [1, 1]} : vector<8x32xf32> to vector<8x8xf32>
    %157 = vector.extract_strided_slice %150 {offsets = [0, 0], sizes = [8, 8], strides = [1, 1]} : vector<8x32xf32> to vector<8x8xf32>
    %158 = vector.extract_strided_slice %151 {offsets = [0, 0], sizes = [8, 8], strides = [1, 1]} : vector<8x32xf32> to vector<8x8xf32>
    %cst_71 = arith.constant dense<0.000000e+00> : vector<8x8xf32>
    %159 = tpu.matmul %156, %157, %cst_71 {dimension_numbers = #tpu.dot_dimension_numbers<[1], [1], [0], [0], [0, 0, 1, 0], [], []>} : vector<8x8xf32>, vector<8x8xf32>, vector<8x8xf32> -> vector<8x8xf32>
    %160 = arith.addf %159, %153 : vector<8x8xf32>
    %cst_72 = arith.constant dense<0xFF800000> : vector<8xf32>
    %161 = vector.multi_reduction <maximumf>, %160, %cst_72 [1] : vector<8x8xf32> to vector<8xf32>
    %162 = vector.shape_cast %161 : vector<8xf32> to vector<8x1xf32>
    %163 = vector.broadcast %162 : vector<8x1xf32> to vector<8x8xf32>
    %164 = arith.subf %160, %163 : vector<8x8xf32>
    %165 = math.exp %164 : vector<8x8xf32>
    %cst_73 = arith.constant dense<0.000000e+00> : vector<8xf32>
    %166 = vector.multi_reduction <add>, %165, %cst_73 [1] : vector<8x8xf32> to vector<8xf32>
    %167 = vector.shape_cast %166 : vector<8xf32> to vector<8x1xf32>
    %168 = tpu.reciprocal %167 {approx = true} : vector<8x1xf32> -> vector<8x1xf32>
    %169 = vector.broadcast %168 : vector<8x1xf32> to vector<8x8xf32>
    %170 = arith.mulf %165, %169 : vector<8x8xf32>
    %cst_74 = arith.constant dense<0.000000e+00> : vector<8x8xf32>
    %171 = tpu.matmul %170, %158, %cst_74 {dimension_numbers = #tpu.dot_dimension_numbers<[1], [0], [0], [1], [0, 0, 1, 1], [], []>} : vector<8x8xf32>, vector<8x8xf32>, vector<8x8xf32> -> vector<8x8xf32>
    %172 = vector.extract_strided_slice %154 {offsets = [0, 0], sizes = [8, 32], strides = [1, 1]} : vector<32x32xf32> to vector<8x32xf32>
    %cst_75 = arith.constant dense<0.000000e+00> : vector<8x32xf32>
    %173 = tpu.matmul %171, %172, %cst_75 {dimension_numbers = #tpu.dot_dimension_numbers<[1], [0], [0], [1], [0, 0, 1, 1], [], []>} : vector<8x8xf32>, vector<8x32xf32>, vector<8x32xf32> -> vector<8x32xf32>
    %174 = arith.addf %155, %173 : vector<8x32xf32>
    %175 = vector.extract_strided_slice %142 {offsets = [0, 8], sizes = [8, 8], strides = [1, 1]} : vector<8x32xf32> to vector<8x8xf32>
    %176 = vector.extract_strided_slice %150 {offsets = [0, 8], sizes = [8, 8], strides = [1, 1]} : vector<8x32xf32> to vector<8x8xf32>
    %177 = vector.extract_strided_slice %151 {offsets = [0, 8], sizes = [8, 8], strides = [1, 1]} : vector<8x32xf32> to vector<8x8xf32>
    %cst_76 = arith.constant dense<0.000000e+00> : vector<8x8xf32>
    %178 = tpu.matmul %175, %176, %cst_76 {dimension_numbers = #tpu.dot_dimension_numbers<[1], [1], [0], [0], [0, 0, 1, 0], [], []>} : vector<8x8xf32>, vector<8x8xf32>, vector<8x8xf32> -> vector<8x8xf32>
    %179 = arith.addf %178, %153 : vector<8x8xf32>
    %cst_77 = arith.constant dense<0xFF800000> : vector<8xf32>
    %180 = vector.multi_reduction <maximumf>, %179, %cst_77 [1] : vector<8x8xf32> to vector<8xf32>
    %181 = vector.shape_cast %180 : vector<8xf32> to vector<8x1xf32>
    %182 = vector.broadcast %181 : vector<8x1xf32> to vector<8x8xf32>
    %183 = arith.subf %179, %182 : vector<8x8xf32>
    %184 = math.exp %183 : vector<8x8xf32>
    %cst_78 = arith.constant dense<0.000000e+00> : vector<8xf32>
    %185 = vector.multi_reduction <add>, %184, %cst_78 [1] : vector<8x8xf32> to vector<8xf32>
    %186 = vector.shape_cast %185 : vector<8xf32> to vector<8x1xf32>
    %187 = tpu.reciprocal %186 {approx = true} : vector<8x1xf32> -> vector<8x1xf32>
    %188 = vector.broadcast %187 : vector<8x1xf32> to vector<8x8xf32>
    %189 = arith.mulf %184, %188 : vector<8x8xf32>
    %cst_79 = arith.constant dense<0.000000e+00> : vector<8x8xf32>
    %190 = tpu.matmul %189, %177, %cst_79 {dimension_numbers = #tpu.dot_dimension_numbers<[1], [0], [0], [1], [0, 0, 1, 1], [], []>} : vector<8x8xf32>, vector<8x8xf32>, vector<8x8xf32> -> vector<8x8xf32>
    %191 = vector.extract_strided_slice %154 {offsets = [8, 0], sizes = [8, 32], strides = [1, 1]} : vector<32x32xf32> to vector<8x32xf32>
    %cst_80 = arith.constant dense<0.000000e+00> : vector<8x32xf32>
    %192 = tpu.matmul %190, %191, %cst_80 {dimension_numbers = #tpu.dot_dimension_numbers<[1], [0], [0], [1], [0, 0, 1, 1], [], []>} : vector<8x8xf32>, vector<8x32xf32>, vector<8x32xf32> -> vector<8x32xf32>
    %193 = arith.addf %174, %192 : vector<8x32xf32>
    %194 = vector.extract_strided_slice %142 {offsets = [0, 16], sizes = [8, 8], strides = [1, 1]} : vector<8x32xf32> to vector<8x8xf32>
    %195 = vector.extract_strided_slice %150 {offsets = [0, 16], sizes = [8, 8], strides = [1, 1]} : vector<8x32xf32> to vector<8x8xf32>
    %196 = vector.extract_strided_slice %151 {offsets = [0, 16], sizes = [8, 8], strides = [1, 1]} : vector<8x32xf32> to vector<8x8xf32>
    %cst_81 = arith.constant dense<0.000000e+00> : vector<8x8xf32>
    %197 = tpu.matmul %194, %195, %cst_81 {dimension_numbers = #tpu.dot_dimension_numbers<[1], [1], [0], [0], [0, 0, 1, 0], [], []>} : vector<8x8xf32>, vector<8x8xf32>, vector<8x8xf32> -> vector<8x8xf32>
    %198 = arith.addf %197, %153 : vector<8x8xf32>
    %cst_82 = arith.constant dense<0xFF800000> : vector<8xf32>
    %199 = vector.multi_reduction <maximumf>, %198, %cst_82 [1] : vector<8x8xf32> to vector<8xf32>
    %200 = vector.shape_cast %199 : vector<8xf32> to vector<8x1xf32>
    %201 = vector.broadcast %200 : vector<8x1xf32> to vector<8x8xf32>
    %202 = arith.subf %198, %201 : vector<8x8xf32>
    %203 = math.exp %202 : vector<8x8xf32>
    %cst_83 = arith.constant dense<0.000000e+00> : vector<8xf32>
    %204 = vector.multi_reduction <add>, %203, %cst_83 [1] : vector<8x8xf32> to vector<8xf32>
    %205 = vector.shape_cast %204 : vector<8xf32> to vector<8x1xf32>
    %206 = tpu.reciprocal %205 {approx = true} : vector<8x1xf32> -> vector<8x1xf32>
    %207 = vector.broadcast %206 : vector<8x1xf32> to vector<8x8xf32>
    %208 = arith.mulf %203, %207 : vector<8x8xf32>
    %cst_84 = arith.constant dense<0.000000e+00> : vector<8x8xf32>
    %209 = tpu.matmul %208, %196, %cst_84 {dimension_numbers = #tpu.dot_dimension_numbers<[1], [0], [0], [1], [0, 0, 1, 1], [], []>} : vector<8x8xf32>, vector<8x8xf32>, vector<8x8xf32> -> vector<8x8xf32>
    %210 = vector.extract_strided_slice %154 {offsets = [16, 0], sizes = [8, 32], strides = [1, 1]} : vector<32x32xf32> to vector<8x32xf32>
    %cst_85 = arith.constant dense<0.000000e+00> : vector<8x32xf32>
    %211 = tpu.matmul %209, %210, %cst_85 {dimension_numbers = #tpu.dot_dimension_numbers<[1], [0], [0], [1], [0, 0, 1, 1], [], []>} : vector<8x8xf32>, vector<8x32xf32>, vector<8x32xf32> -> vector<8x32xf32>
    %212 = arith.addf %193, %211 : vector<8x32xf32>
    %213 = vector.extract_strided_slice %142 {offsets = [0, 24], sizes = [8, 8], strides = [1, 1]} : vector<8x32xf32> to vector<8x8xf32>
    %214 = vector.extract_strided_slice %150 {offsets = [0, 24], sizes = [8, 8], strides = [1, 1]} : vector<8x32xf32> to vector<8x8xf32>
    %215 = vector.extract_strided_slice %151 {offsets = [0, 24], sizes = [8, 8], strides = [1, 1]} : vector<8x32xf32> to vector<8x8xf32>
    %cst_86 = arith.constant dense<0.000000e+00> : vector<8x8xf32>
    %216 = tpu.matmul %213, %214, %cst_86 {dimension_numbers = #tpu.dot_dimension_numbers<[1], [1], [0], [0], [0, 0, 1, 0], [], []>} : vector<8x8xf32>, vector<8x8xf32>, vector<8x8xf32> -> vector<8x8xf32>
    %217 = arith.addf %216, %153 : vector<8x8xf32>
    %cst_87 = arith.constant dense<0xFF800000> : vector<8xf32>
    %218 = vector.multi_reduction <maximumf>, %217, %cst_87 [1] : vector<8x8xf32> to vector<8xf32>
    %219 = vector.shape_cast %218 : vector<8xf32> to vector<8x1xf32>
    %220 = vector.broadcast %219 : vector<8x1xf32> to vector<8x8xf32>
    %221 = arith.subf %217, %220 : vector<8x8xf32>
    %222 = math.exp %221 : vector<8x8xf32>
    %cst_88 = arith.constant dense<0.000000e+00> : vector<8xf32>
    %223 = vector.multi_reduction <add>, %222, %cst_88 [1] : vector<8x8xf32> to vector<8xf32>
    %224 = vector.shape_cast %223 : vector<8xf32> to vector<8x1xf32>
    %225 = tpu.reciprocal %224 {approx = true} : vector<8x1xf32> -> vector<8x1xf32>
    %226 = vector.broadcast %225 : vector<8x1xf32> to vector<8x8xf32>
    %227 = arith.mulf %222, %226 : vector<8x8xf32>
    %cst_89 = arith.constant dense<0.000000e+00> : vector<8x8xf32>
    %228 = tpu.matmul %227, %215, %cst_89 {dimension_numbers = #tpu.dot_dimension_numbers<[1], [0], [0], [1], [0, 0, 1, 1], [], []>} : vector<8x8xf32>, vector<8x8xf32>, vector<8x8xf32> -> vector<8x8xf32>
    %229 = vector.extract_strided_slice %154 {offsets = [24, 0], sizes = [8, 32], strides = [1, 1]} : vector<32x32xf32> to vector<8x32xf32>
    %cst_90 = arith.constant dense<0.000000e+00> : vector<8x32xf32>
    %230 = tpu.matmul %228, %229, %cst_90 {dimension_numbers = #tpu.dot_dimension_numbers<[1], [0], [0], [1], [0, 0, 1, 1], [], []>} : vector<8x8xf32>, vector<8x32xf32>, vector<8x32xf32> -> vector<8x32xf32>
    %231 = arith.addf %212, %230 : vector<8x32xf32>
    %232 = arith.addf %115, %231 : vector<8x32xf32>
    %c0_91 = arith.constant 0 : index
    %c0_92 = arith.constant 0 : index
    %233 = vector.load %arg18[%c0_91, %c0_92] : memref<1x32xf32, #tpu.memory_space<vmem>>, vector<1x32xf32>
    %234 = vector.broadcast %233 : vector<1x32xf32> to vector<8x32xf32>
    %235 = arith.addf %232, %234 : vector<8x32xf32>
    %c0_93 = arith.constant 0 : index
    %c0_94 = arith.constant 0 : index
    %236 = vector.load %arg19[%c0_93, %c0_94] : memref<1x32xf32, #tpu.memory_space<vmem>>, vector<1x32xf32>
    %c0_95 = arith.constant 0 : index
    %c0_96 = arith.constant 0 : index
    %237 = vector.load %arg20[%c0_95, %c0_96] : memref<1x32xf32, #tpu.memory_space<vmem>>, vector<1x32xf32>
    %cst_97 = arith.constant dense<0.000000e+00> : vector<8xf32>
    %238 = vector.multi_reduction <add>, %235, %cst_97 [1] : vector<8x32xf32> to vector<8xf32>
    %239 = vector.shape_cast %238 : vector<8xf32> to vector<8x1xf32>
    %cst_98 = arith.constant 3.200000e+01 : f32
    %240 = vector.broadcast %cst_98 : f32 to vector<8x1xf32>
    %241 = arith.divf %239, %240 : vector<8x1xf32>
    %242 = vector.broadcast %241 : vector<8x1xf32> to vector<8x32xf32>
    %243 = arith.subf %235, %242 : vector<8x32xf32>
    %244 = arith.mulf %243, %243 : vector<8x32xf32>
    %cst_99 = arith.constant dense<0.000000e+00> : vector<8xf32>
    %245 = vector.multi_reduction <add>, %244, %cst_99 [1] : vector<8x32xf32> to vector<8xf32>
    %246 = vector.shape_cast %245 : vector<8xf32> to vector<8x1xf32>
    %cst_100 = arith.constant 3.100000e+01 : f32
    %247 = vector.broadcast %cst_100 : f32 to vector<8x1xf32>
    %248 = arith.divf %246, %247 : vector<8x1xf32>
    %249 = vector.broadcast %236 : vector<1x32xf32> to vector<8x32xf32>
    %250 = arith.mulf %249, %243 : vector<8x32xf32>
    %251 = math.sqrt %248 : vector<8x1xf32>
    %cst_101 = arith.constant 9.99999997E-7 : f32
    %252 = vector.broadcast %cst_101 : f32 to vector<8x1xf32>
    %253 = arith.addf %251, %252 : vector<8x1xf32>
    %254 = vector.broadcast %253 : vector<8x1xf32> to vector<8x32xf32>
    %255 = arith.divf %250, %254 : vector<8x32xf32>
    %256 = vector.broadcast %237 : vector<1x32xf32> to vector<8x32xf32>
    %257 = arith.addf %255, %256 : vector<8x32xf32>
    %c0_102 = arith.constant 0 : index
    %c0_103 = arith.constant 0 : index
    %258 = vector.load %arg21[%c0_102, %c0_103] : memref<32x64xf32, #tpu.memory_space<vmem>>, vector<32x64xf32>
    %cst_104 = arith.constant dense<0.000000e+00> : vector<8x64xf32>
    %259 = tpu.matmul %257, %258, %cst_104 {dimension_numbers = #tpu.dot_dimension_numbers<[1], [0], [0], [1], [0, 0, 1, 1], [], []>} : vector<8x32xf32>, vector<32x64xf32>, vector<8x64xf32> -> vector<8x64xf32>
    %c0_105 = arith.constant 0 : index
    %c0_106 = arith.constant 0 : index
    %260 = vector.load %arg22[%c0_105, %c0_106] : memref<1x64xf32, #tpu.memory_space<vmem>>, vector<1x64xf32>
    %261 = vector.broadcast %260 : vector<1x64xf32> to vector<8x64xf32>
    %262 = arith.addf %259, %261 : vector<8x64xf32>
    %cst_107 = arith.constant 0.000000e+00 : f32
    %263 = vector.broadcast %cst_107 : f32 to vector<8x64xf32>
    %264 = arith.maximumf %262, %263 : vector<8x64xf32>
    %c0_108 = arith.constant 0 : index
    %c0_109 = arith.constant 0 : index
    %265 = vector.load %arg23[%c0_108, %c0_109] : memref<64x32xf32, #tpu.memory_space<vmem>>, vector<64x32xf32>
    %cst_110 = arith.constant dense<0.000000e+00> : vector<8x32xf32>
    %266 = tpu.matmul %264, %265, %cst_110 {dimension_numbers = #tpu.dot_dimension_numbers<[1], [0], [0], [1], [0, 0, 1, 1], [], []>} : vector<8x64xf32>, vector<64x32xf32>, vector<8x32xf32> -> vector<8x32xf32>
    %c0_111 = arith.constant 0 : index
    %c0_112 = arith.constant 0 : index
    %267 = vector.load %arg24[%c0_111, %c0_112] : memref<1x32xf32, #tpu.memory_space<vmem>>, vector<1x32xf32>
    %268 = vector.broadcast %267 : vector<1x32xf32> to vector<8x32xf32>
    %269 = arith.addf %266, %268 : vector<8x32xf32>
    %270 = arith.addf %235, %269 : vector<8x32xf32>
    %c0_113 = arith.constant 0 : index
    %c0_114 = arith.constant 0 : index
    %c0_115 = arith.constant 0 : index
    %271 = vector.load %arg25[%c0_113, %c0_114, %c0_115] : memref<1x8x32xf32, #tpu.memory_space<vmem>>, vector<1x8x32xf32>
    %272 = vector.shape_cast %271 : vector<1x8x32xf32> to vector<8x32xf32>
    %273 = vector.shape_cast %270 : vector<8x32xf32> to vector<1x8x32xf32>
    tpu.vector_store %arg25[%c0_113, %c0_114, %c0_115], %273 {strides = array<i32>} : memref<1x8x32xf32, #tpu.memory_space<vmem>>, vector<1x8x32xf32>,
    return
  }
  func.func @transform_0(%arg0: i32) -> (i32, i32, i32) {
    %c0_i32 = arith.constant 0 : i32
    %c0_i32_0 = arith.constant 0 : i32
    %c0_i32_1 = arith.constant 0 : i32
    return %arg0, %c0_i32, %c0_i32_0 : i32, i32, i32
  }
  func.func @transform_1(%arg0: i32) -> (i32, i32, i32) {
    %c0_i32 = arith.constant 0 : i32
    %c0_i32_0 = arith.constant 0 : i32
    %c0_i32_1 = arith.constant 0 : i32
    return %arg0, %c0_i32, %c0_i32_0 : i32, i32, i32
  }
  func.func @transform_2(%arg0: i32) -> (i32, i32, i32) {
    %c0_i32 = arith.constant 0 : i32
    %c0_i32_0 = arith.constant 0 : i32
    %c0_i32_1 = arith.constant 0 : i32
    return %arg0, %c0_i32, %c0_i32_0 : i32, i32, i32
  }
  func.func @transform_3(%arg0: i32) -> (i32, i32, i32) {
    %c0_i32 = arith.constant 0 : i32
    %c0_i32_0 = arith.constant 0 : i32
    %c0_i32_1 = arith.constant 0 : i32
    return %arg0, %c0_i32, %c0_i32_0 : i32, i32, i32
  }
  func.func @transform_4(%arg0: i32) -> (i32, i32) {
    %c0_i32 = arith.constant 0 : i32
    %c0_i32_0 = arith.constant 0 : i32
    %c0_i32_1 = arith.constant 0 : i32
    return %c0_i32, %c0_i32_0 : i32, i32
  }
  func.func @transform_5(%arg0: i32) -> (i32, i32) {
    %c0_i32 = arith.constant 0 : i32
    %c0_i32_0 = arith.constant 0 : i32
    %c0_i32_1 = arith.constant 0 : i32
    return %c0_i32, %c0_i32_0 : i32, i32
  }
  func.func @transform_6(%arg0: i32) -> (i32, i32) {
    %c0_i32 = arith.constant 0 : i32
    %c0_i32_0 = arith.constant 0 : i32
    %c0_i32_1 = arith.constant 0 : i32
    return %c0_i32, %c0_i32_0 : i32, i32
  }
  func.func @transform_7(%arg0: i32) -> (i32, i32) {
    %c0_i32 = arith.constant 0 : i32
    %c0_i32_0 = arith.constant 0 : i32
    %c0_i32_1 = arith.constant 0 : i32
    return %c0_i32, %c0_i32_0 : i32, i32
  }
  func.func @transform_8(%arg0: i32) -> (i32, i32) {
    %c0_i32 = arith.constant 0 : i32
    %c0_i32_0 = arith.constant 0 : i32
    %c0_i32_1 = arith.constant 0 : i32
    return %c0_i32, %c0_i32_0 : i32, i32
  }
  func.func @transform_9(%arg0: i32) -> (i32, i32) {
    %c0_i32 = arith.constant 0 : i32
    %c0_i32_0 = arith.constant 0 : i32
    %c0_i32_1 = arith.constant 0 : i32
    return %c0_i32, %c0_i32_0 : i32, i32
  }
  func.func @transform_10(%arg0: i32) -> (i32, i32) {
    %c0_i32 = arith.constant 0 : i32
    %c0_i32_0 = arith.constant 0 : i32
    %c0_i32_1 = arith.constant 0 : i32
    return %c0_i32, %c0_i32_0 : i32, i32
  }
  func.func @transform_11(%arg0: i32) -> (i32, i32) {
    %c0_i32 = arith.constant 0 : i32
    %c0_i32_0 = arith.constant 0 : i32
    %c0_i32_1 = arith.constant 0 : i32
    return %c0_i32, %c0_i32_0 : i32, i32
  }
  func.func @transform_12(%arg0: i32) -> (i32, i32) {
    %c0_i32 = arith.constant 0 : i32
    %c0_i32_0 = arith.constant 0 : i32
    %c0_i32_1 = arith.constant 0 : i32
    return %c0_i32, %c0_i32_0 : i32, i32
  }
  func.func @transform_13(%arg0: i32) -> (i32, i32) {
    %c0_i32 = arith.constant 0 : i32
    %c0_i32_0 = arith.constant 0 : i32
    %c0_i32_1 = arith.constant 0 : i32
    return %c0_i32, %c0_i32_0 : i32, i32
  }
  func.func @transform_14(%arg0: i32) -> (i32, i32) {
    %c0_i32 = arith.constant 0 : i32
    %c0_i32_0 = arith.constant 0 : i32
    %c0_i32_1 = arith.constant 0 : i32
    return %c0_i32, %c0_i32_0 : i32, i32
  }
  func.func @transform_15(%arg0: i32) -> (i32, i32) {
    %c0_i32 = arith.constant 0 : i32
    %c0_i32_0 = arith.constant 0 : i32
    %c0_i32_1 = arith.constant 0 : i32
    return %c0_i32, %c0_i32_0 : i32, i32
  }
  func.func @transform_16(%arg0: i32) -> (i32, i32) {
    %c0_i32 = arith.constant 0 : i32
    %c0_i32_0 = arith.constant 0 : i32
    %c0_i32_1 = arith.constant 0 : i32
    return %c0_i32, %c0_i32_0 : i32, i32
  }
  func.func @transform_17(%arg0: i32) -> (i32, i32) {
    %c0_i32 = arith.constant 0 : i32
    %c0_i32_0 = arith.constant 0 : i32
    %c0_i32_1 = arith.constant 0 : i32
    return %c0_i32, %c0_i32_0 : i32, i32
  }
  func.func @transform_18(%arg0: i32) -> (i32, i32) {
    %c0_i32 = arith.constant 0 : i32
    %c0_i32_0 = arith.constant 0 : i32
    %c0_i32_1 = arith.constant 0 : i32
    return %c0_i32, %c0_i32_0 : i32, i32
  }
  func.func @transform_19(%arg0: i32) -> (i32, i32) {
    %c0_i32 = arith.constant 0 : i32
    %c0_i32_0 = arith.constant 0 : i32
    %c0_i32_1 = arith.constant 0 : i32
    return %c0_i32, %c0_i32_0 : i32, i32
  }
  func.func @transform_20(%arg0: i32) -> (i32, i32) {
    %c0_i32 = arith.constant 0 : i32
    %c0_i32_0 = arith.constant 0 : i32
    %c0_i32_1 = arith.constant 0 : i32
    return %c0_i32, %c0_i32_0 : i32, i32
  }
  func.func @transform_21(%arg0: i32) -> (i32, i32) {
    %c0_i32 = arith.constant 0 : i32
    %c0_i32_0 = arith.constant 0 : i32
    %c0_i32_1 = arith.constant 0 : i32
    return %c0_i32, %c0_i32_0 : i32, i32
  }
  func.func @transform_22(%arg0: i32) -> (i32, i32) {
    %c0_i32 = arith.constant 0 : i32
    %c0_i32_0 = arith.constant 0 : i32
    %c0_i32_1 = arith.constant 0 : i32
    return %c0_i32, %c0_i32_0 : i32, i32
  }
  func.func @transform_23(%arg0: i32) -> (i32, i32) {
    %c0_i32 = arith.constant 0 : i32
    %c0_i32_0 = arith.constant 0 : i32
    %c0_i32_1 = arith.constant 0 : i32
    return %c0_i32, %c0_i32_0 : i32, i32
  }
  func.func @transform_24(%arg0: i32) -> (i32, i32, i32) {
    %c0_i32 = arith.constant 0 : i32
    %c0_i32_0 = arith.constant 0 : i32
    %c0_i32_1 = arith.constant 0 : i32
    return %arg0, %c0_i32, %c0_i32_0 : i32, i32, i32
  }
}

</mosaic_0001>

<llo_original>
// kernel: tpu_custom_call.1
$region0: #{tpu_custom_call.1}
  #allocation0 [shape = 'u32[]', space=smem, size = 0x4, offset = 0x4, fixed_abs, tag = 'smem constant byte address 0x4 - core index']
  #allocation1 [shape = 'u32[72,128]{1,0:T(1,128)}', space=vmem, size = 0x9000, scoped, tag = 'internal scratch']
  %s0 = inlined_call_operand.hbm [shape: f32[2,8,32], index: 0, kind: input, shape index: {}]
  %s1 = inlined_call_operand.hbm [shape: f32[2,8,32], index: 1, kind: input, shape index: {}]
  %s2 = inlined_call_operand.hbm [shape: f32[2,8,8], index: 2, kind: input, shape index: {}]
  %s3 = inlined_call_operand.hbm [shape: f32[2,8,8], index: 3, kind: input, shape index: {}]
  %s4 = inlined_call_operand.vmem [shape: f32[1,32], index: 4, kind: input, shape index: {}]
  %s5 = inlined_call_operand.vmem [shape: f32[1,32], index: 5, kind: input, shape index: {}]
  %s6 = inlined_call_operand.vmem [shape: f32[32,96], index: 6, kind: input, shape index: {}]
  %s7 = inlined_call_operand.vmem [shape: f32[1,96], index: 7, kind: input, shape index: {}]
  %s8 = inlined_call_operand.vmem [shape: f32[32,32], index: 8, kind: input, shape index: {}]
  %s9 = inlined_call_operand.vmem [shape: f32[1,32], index: 9, kind: input, shape index: {}]
  %s10 = inlined_call_operand.vmem [shape: f32[1,32], index: 10, kind: input, shape index: {}]
  %s11 = inlined_call_operand.vmem [shape: f32[1,32], index: 11, kind: input, shape index: {}]
  %s12 = inlined_call_operand.vmem [shape: f32[32,32], index: 12, kind: input, shape index: {}]
  %s13 = inlined_call_operand.vmem [shape: f32[1,32], index: 13, kind: input, shape index: {}]
  %s14 = inlined_call_operand.hbm [shape: f32[32,64], index: 14, kind: input, shape index: {}]
  %s15 = inlined_call_operand.vmem [shape: f32[1,64], index: 15, kind: input, shape index: {}]
  %s16 = inlined_call_operand.hbm [shape: f32[32,32], index: 16, kind: input, shape index: {}]
  %s17 = inlined_call_operand.vmem [shape: f32[1,32], index: 17, kind: input, shape index: {}]
  %s18 = inlined_call_operand.vmem [shape: f32[1,32], index: 18, kind: input, shape index: {}]
  %s19 = inlined_call_operand.vmem [shape: f32[1,32], index: 19, kind: input, shape index: {}]
  %s20 = inlined_call_operand.hbm [shape: f32[32,64], index: 20, kind: input, shape index: {}]
  %s21 = inlined_call_operand.vmem [shape: f32[1,64], index: 21, kind: input, shape index: {}]
  %s22 = inlined_call_operand.vmem [shape: f32[64,32], index: 22, kind: input, shape index: {}]
  %s23 = inlined_call_operand.vmem [shape: f32[1,32], index: 23, kind: input, shape index: {}]
  %s24 = inlined_call_operand.hbm [shape: f32[2,8,32], index: 24, kind: output, shape index: {}]
  %s25 = sld [smem:[#allocation0]]
  $region157: #{tpu_custom_call.1} parent=0
    _
  %s27 = ssub.s32 1, %s25
  %s28 = scalar_select 0, %s27, %s25
  $region1: #{tpu_custom_call.1} parent=0
    #allocation2 [shape = 'u8[8192]{0}', space=vmem, size = 0x2000, scoped, tag = 'input window, operand 0']
    #allocation3 [shape = 's32[2]{0}', space=sflag, size = 0x8, scoped, tag = 'scoped memory for tpu_custom_call.1']
    #allocation4 [shape = 's32[2]{0}', space=sflag, size = 0x8, scoped, tag = 'scoped memory for tpu_custom_call.1']
    #allocation5 [shape = 'u8[8192]{0}', space=vmem, size = 0x2000, scoped, tag = 'input window, operand 1']
    #allocation6 [shape = 's32[2]{0}', space=sflag, size = 0x8, scoped, tag = 'scoped memory for tpu_custom_call.1']
    #allocation7 [shape = 'u8[8192]{0}', space=vmem, size = 0x2000, scoped, tag = 'input window, operand 2']
    #allocation8 [shape = 'u8[8192]{0}', space=vmem, size = 0x2000, scoped, tag = 'input window, operand 3']
    #allocation9 [shape = 's32[2]{0}', space=sflag, size = 0x8, scoped, tag = 'scoped memory for tpu_custom_call.1']
    #allocation10 [shape = 'u8[16384]{0}', space=vmem, size = 0x4000, scoped, tag = 'input window, operand 14, single buffered']
    #allocation11 [shape = 'u8[16384]{0}', space=vmem, size = 0x4000, scoped, tag = 'input window, operand 16, single buffered']
    #allocation12 [shape = 's32[1]{0}', space=sflag, size = 0x4, scoped, tag = 'scoped memory for tpu_custom_call.1']
    #allocation13 [shape = 'u8[16384]{0}', space=vmem, size = 0x4000, scoped, tag = 'input window, operand 20, single buffered']
    #allocation14 [shape = 'u8[8192]{0}', space=vmem, size = 0x2000, scoped, tag = 'output window, operand 0']
    %29 = vsyncpa [#allocation3], 0
    %s30 = scalar_lea.sflag [#allocation3], 1
    %31 = vsyncpa %s30, 0
    %32 = vsyncpa [#allocation6], 0
    %s33 = scalar_lea.sflag [#allocation6], 1
    %34 = vsyncpa %s33, 0
    %35 = vsyncpa [#allocation9], 0
    %s36 = scalar_lea.sflag [#allocation9], 1
    %37 = vsyncpa %s36, 0
    %38 = vsyncpa [#allocation12], 0
    %39 = vsyncpa [#allocation4], 0
    %s40 = scalar_lea.sflag [#allocation4], 1
    %41 = vsyncpa %s40, 0
    loop: start=0, step=1, limit=4
    $region2: #{tpu_custom_call.1} parent=1 // loop_pre_header
      _
    $region3: #{tpu_custom_call.1} parent=1 // loop_header
      %s43 = sphi 0, %s47
      %p44 = scmp.ge.s32.totalorder %s43, 4
      %s53 = sphi 0, %s55
      %s56 = sphi 0, %s53
      %s57 = sphi 0, %s56
      %s73 = sphi 0, %s57
      %s79 = sphi 0, %s81
      %s82 = sphi 0, %s79
      %s83 = sphi 0, %s82
      %s99 = sphi 0, %s83
      %s105 = sphi 0, %s107
      %s108 = sphi 0, %s105
      %s109 = sphi 0, %s108
      %s125 = sphi 0, %s109
      %s131 = sphi 0, %s133
      %s134 = sphi 0, %s131
      %s135 = sphi 0, %s134
      %s151 = sphi 0, %s135
      %s155 = sphi 0, %s155
      %s157 = sphi 0, %s155
      %s158 = sphi 0, %s157
      %s172 = sphi 0, %s158
      %s176 = sphi 0, %s176
      %s178 = sphi 0, %s176
      %s179 = sphi 0, %s178
      %s193 = sphi 0, %s179
      %s197 = sphi 0, %s197
      %s199 = sphi 0, %s197
      %s200 = sphi 0, %s199
      %s214 = sphi 0, %s200
      %s218 = sphi 0, %s218
      %s220 = sphi 0, %s218
      %s221 = sphi 0, %s220
      %s235 = sphi 0, %s221
      %s239 = sphi 0, %s239
      %s241 = sphi 0, %s239
      %s242 = sphi 0, %s241
      %s256 = sphi 0, %s242
      %s260 = sphi 0, %s260
      %s262 = sphi 0, %s260
      %s263 = sphi 0, %s262
      %s277 = sphi 0, %s263
      %s281 = sphi 0, %s281
      %s283 = sphi 0, %s281
      %s284 = sphi 0, %s283
      %s298 = sphi 0, %s284
      %s302 = sphi 0, %s302
      %s304 = sphi 0, %s302
      %s305 = sphi 0, %s304
      %s319 = sphi 0, %s305
      %s323 = sphi 0, %s323
      %s325 = sphi 0, %s323
      %s326 = sphi 0, %s325
      %s340 = sphi 0, %s326
      %s344 = sphi 0, %s344
      %s346 = sphi 0, %s344
      %s347 = sphi 0, %s346
      %s361 = sphi 0, %s347
      %s365 = sphi 0, %s365
      %s367 = sphi 0, %s365
      %s368 = sphi 0, %s367
      %s382 = sphi 0, %s368
      %s386 = sphi 0, %s386
      %s388 = sphi 0, %s386
      %s389 = sphi 0, %s388
      %s403 = sphi 0, %s389
      %s407 = sphi 0, %s407
      %s409 = sphi 0, %s407
      %s410 = sphi 0, %s409
      %s424 = sphi 0, %s410
      %s428 = sphi 0, %s428
      %s430 = sphi 0, %s428
      %s431 = sphi 0, %s430
      %s445 = sphi 0, %s431
      %s449 = sphi 0, %s449
      %s451 = sphi 0, %s449
      %s452 = sphi 0, %s451
      %s466 = sphi 0, %s452
      %s470 = sphi 0, %s470
      %s472 = sphi 0, %s470
      %s473 = sphi 0, %s472
      %s487 = sphi 0, %s473
      %s491 = sphi 0, %s491
      %s493 = sphi 0, %s491
      %s494 = sphi 0, %s493
      %s508 = sphi 0, %s494
      %s512 = sphi 0, %s512
      %s514 = sphi 0, %s512
      %s515 = sphi 0, %s514
      %s529 = sphi 0, %s515
      %s533 = sphi 0, %s533
      %s535 = sphi 0, %s533
      %s536 = sphi 0, %s535
      %s550 = sphi 0, %s536
      %s554 = sphi 0, %s554
      %s556 = sphi 0, %s554
      %s557 = sphi 0, %s556
      %s571 = sphi 0, %s557
      %s577 = sphi 0, %s579
      %s580 = sphi 0, %s577
      %s581 = sphi 0, %s580
      %s597 = sphi 0, %s581
    $region4: #{tpu_custom_call.1} parent=1 // loop_header_branch
      %46 = sbr.rel (%p44) target = $region8
    $region5: #{tpu_custom_call.1} parent=1 // loop_body
      %s48 = ssub.s32 %s43, 1
      %s49 = ssub.s32 %s43, 2
      %s50 = sadd.s32 %s43, 1
      %s51 = ssub.s32 %s43, %s50
      %p52 = scmp.eq.s32.totalorder %s51, 0
      %s54 = sadd.s32 %s53, 1
      %s55 = scalar_select %p52, %s53, %s54
      %p58 = pneg %p52
      %p59 = scmp.eq.s32.totalorder %s43, 1
      %p60 = por %p58, %p59
      %p61 = scmp.ne.s32.totalorder %s53, %s56
      %p62 = scmp.eq.s32.totalorder %s43, 0
      %p63 = por %p61, %p62
      %p64 = scmp.ne.s32.totalorder %s53, %s56
      %p65 = scmp.eq.s32.totalorder %s48, 1
      %p66 = por %p64, %p65
      %p67 = scmp.ne.s32.totalorder %s56, %s57
      %p68 = scmp.eq.s32.totalorder %s48, 0
      %p69 = por %p67, %p68
      %p70 = scmp.ne.s32.totalorder %s56, %s57
      %p71 = scmp.eq.s32.totalorder %s49, 1
      %p72 = por %p70, %p71
      %p74 = scmp.ne.s32.totalorder %s57, %s73
      %p75 = scmp.eq.s32.totalorder %s49, 0
      %p76 = por %p74, %p75
      %s77 = ssub.s32 %s43, %s50
      %p78 = scmp.eq.s32.totalorder %s77, 0
      %s80 = sadd.s32 %s79, 1
      %s81 = scalar_select %p78, %s79, %s80
      %p84 = pneg %p78
      %p85 = scmp.eq.s32.totalorder %s43, 1
      %p86 = por %p84, %p85
      %p87 = scmp.ne.s32.totalorder %s79, %s82
      %p88 = scmp.eq.s32.totalorder %s43, 0
      %p89 = por %p87, %p88
      %p90 = scmp.ne.s32.totalorder %s79, %s82
      %p91 = scmp.eq.s32.totalorder %s48, 1
      %p92 = por %p90, %p91
      %p93 = scmp.ne.s32.totalorder %s82, %s83
      %p94 = scmp.eq.s32.totalorder %s48, 0
      %p95 = por %p93, %p94
      %p96 = scmp.ne.s32.totalorder %s82, %s83
      %p97 = scmp.eq.s32.totalorder %s49, 1
      %p98 = por %p96, %p97
      %p100 = scmp.ne.s32.totalorder %s83, %s99
      %p101 = scmp.eq.s32.totalorder %s49, 0
      %p102 = por %p100, %p101
      %s103 = ssub.s32 %s43, %s50
      %p104 = scmp.eq.s32.totalorder %s103, 0
      %s106 = sadd.s32 %s105, 1
      %s107 = scalar_select %p104, %s105, %s106
      %p110 = pneg %p104
      %p111 = scmp.eq.s32.totalorder %s43, 1
      %p112 = por %p110, %p111
      %p113 = scmp.ne.s32.totalorder %s105, %s108
      %p114 = scmp.eq.s32.totalorder %s43, 0
      %p115 = por %p113, %p114
      %p116 = scmp.ne.s32.totalorder %s105, %s108
      %p117 = scmp.eq.s32.totalorder %s48, 1
      %p118 = por %p116, %p117
      %p119 = scmp.ne.s32.totalorder %s108, %s109
      %p120 = scmp.eq.s32.totalorder %s48, 0
      %p121 = por %p119, %p120
      %p122 = scmp.ne.s32.totalorder %s108, %s109
      %p123 = scmp.eq.s32.totalorder %s49, 1
      %p124 = por %p122, %p123
      %p126 = scmp.ne.s32.totalorder %s109, %s125
      %p127 = scmp.eq.s32.totalorder %s49, 0
      %p128 = por %p126, %p127
      %s129 = ssub.s32 %s43, %s50
      %p130 = scmp.eq.s32.totalorder %s129, 0
      %s132 = sadd.s32 %s131, 1
      %s133 = scalar_select %p130, %s131, %s132
      %p136 = pneg %p130
      %p137 = scmp.eq.s32.totalorder %s43, 1
      %p138 = por %p136, %p137
      %p139 = scmp.ne.s32.totalorder %s131, %s134
      %p140 = scmp.eq.s32.totalorder %s43, 0
      %p141 = por %p139, %p140
      %p142 = scmp.ne.s32.totalorder %s131, %s134
      %p143 = scmp.eq.s32.totalorder %s48, 1
      %p144 = por %p142, %p143
      %p145 = scmp.ne.s32.totalorder %s134, %s135
      %p146 = scmp.eq.s32.totalorder %s48, 0
      %p147 = por %p145, %p146
      %p148 = scmp.ne.s32.totalorder %s134, %s135
      %p149 = scmp.eq.s32.totalorder %s49, 1
      %p150 = por %p148, %p149
      %p152 = scmp.ne.s32.totalorder %s135, %s151
      %p153 = scmp.eq.s32.totalorder %s49, 0
      %p154 = por %p152, %p153
      %s156 = sadd.s32 %s155, 1
      %p159 = scmp.eq.s32.totalorder %s43, 1
      %p160 = scmp.ne.s32.totalorder %s155, %s157
      %p161 = scmp.eq.s32.totalorder %s43, 0
      %p162 = por %p160, %p161
      %p163 = scmp.ne.s32.totalorder %s155, %s157
      %p164 = scmp.eq.s32.totalorder %s48, 1
      %p165 = por %p163, %p164
      %p166 = scmp.ne.s32.totalorder %s157, %s158
      %p167 = scmp.eq.s32.totalorder %s48, 0
      %p168 = por %p166, %p167
      %p169 = scmp.ne.s32.totalorder %s157, %s158
      %p170 = scmp.eq.s32.totalorder %s49, 1
      %p171 = por %p169, %p170
      %p173 = scmp.ne.s32.totalorder %s158, %s172
      %p174 = scmp.eq.s32.totalorder %s49, 0
      %p175 = por %p173, %p174
      %s177 = sadd.s32 %s176, 1
      %p180 = scmp.eq.s32.totalorder %s43, 1
      %p181 = scmp.ne.s32.totalorder %s176, %s178
      %p182 = scmp.eq.s32.totalorder %s43, 0
      %p183 = por %p181, %p182
      %p184 = scmp.ne.s32.totalorder %s176, %s178
      %p185 = scmp.eq.s32.totalorder %s48, 1
      %p186 = por %p184, %p185
      %p187 = scmp.ne.s32.totalorder %s178, %s179
      %p188 = scmp.eq.s32.totalorder %s48, 0
      %p189 = por %p187, %p188
      %p190 = scmp.ne.s32.totalorder %s178, %s179
      %p191 = scmp.eq.s32.totalorder %s49, 1
      %p192 = por %p190, %p191
      %p194 = scmp.ne.s32.totalorder %s179, %s193
      %p195 = scmp.eq.s32.totalorder %s49, 0
      %p196 = por %p194, %p195
      %s198 = sadd.s32 %s197, 1
      %p201 = scmp.eq.s32.totalorder %s43, 1
      %p202 = scmp.ne.s32.totalorder %s197, %s199
      %p203 = scmp.eq.s32.totalorder %s43, 0
      %p204 = por %p202, %p203
      %p205 = scmp.ne.s32.totalorder %s197, %s199
      %p206 = scmp.eq.s32.totalorder %s48, 1
      %p207 = por %p205, %p206
      %p208 = scmp.ne.s32.totalorder %s199, %s200
      %p209 = scmp.eq.s32.totalorder %s48, 0
      %p210 = por %p208, %p209
      %p211 = scmp.ne.s32.totalorder %s199, %s200
      %p212 = scmp.eq.s32.totalorder %s49, 1
      %p213 = por %p211, %p212
      %p215 = scmp.ne.s32.totalorder %s200, %s214
      %p216 = scmp.eq.s32.totalorder %s49, 0
      %p217 = por %p215, %p216
      %s219 = sadd.s32 %s218, 1
      %p222 = scmp.eq.s32.totalorder %s43, 1
      %p223 = scmp.ne.s32.totalorder %s218, %s220
      %p224 = scmp.eq.s32.totalorder %s43, 0
      %p225 = por %p223, %p224
      %p226 = scmp.ne.s32.totalorder %s218, %s220
      %p227 = scmp.eq.s32.totalorder %s48, 1
      %p228 = por %p226, %p227
      %p229 = scmp.ne.s32.totalorder %s220, %s221
      %p230 = scmp.eq.s32.totalorder %s48, 0
      %p231 = por %p229, %p230
      %p232 = scmp.ne.s32.totalorder %s220, %s221
      %p233 = scmp.eq.s32.totalorder %s49, 1
      %p234 = por %p232, %p233
      %p236 = scmp.ne.s32.totalorder %s221, %s235
      %p237 = scmp.eq.s32.totalorder %s49, 0
      %p238 = por %p236, %p237
      %s240 = sadd.s32 %s239, 1
      %p243 = scmp.eq.s32.totalorder %s43, 1
      %p244 = scmp.ne.s32.totalorder %s239, %s241
      %p245 = scmp.eq.s32.totalorder %s43, 0
      %p246 = por %p244, %p245
      %p247 = scmp.ne.s32.totalorder %s239, %s241
      %p248 = scmp.eq.s32.totalorder %s48, 1
      %p249 = por %p247, %p248
      %p250 = scmp.ne.s32.totalorder %s241, %s242
      %p251 = scmp.eq.s32.totalorder %s48, 0
      %p252 = por %p250, %p251
      %p253 = scmp.ne.s32.totalorder %s241, %s242
      %p254 = scmp.eq.s32.totalorder %s49, 1
      %p255 = por %p253, %p254
      %p257 = scmp.ne.s32.totalorder %s242, %s256
      %p258 = scmp.eq.s32.totalorder %s49, 0
      %p259 = por %p257, %p258
      %s261 = sadd.s32 %s260, 1
      %p264 = scmp.eq.s32.totalorder %s43, 1
      %p265 = scmp.ne.s32.totalorder %s260, %s262
      %p266 = scmp.eq.s32.totalorder %s43, 0
      %p267 = por %p265, %p266
      %p268 = scmp.ne.s32.totalorder %s260, %s262
      %p269 = scmp.eq.s32.totalorder %s48, 1
      %p270 = por %p268, %p269
      %p271 = scmp.ne.s32.totalorder %s262, %s263
      %p272 = scmp.eq.s32.totalorder %s48, 0
      %p273 = por %p271, %p272
      %p274 = scmp.ne.s32.totalorder %s262, %s263
      %p275 = scmp.eq.s32.totalorder %s49, 1
      %p276 = por %p274, %p275
      %p278 = scmp.ne.s32.totalorder %s263, %s277
      %p279 = scmp.eq.s32.totalorder %s49, 0
      %p280 = por %p278, %p279
      %s282 = sadd.s32 %s281, 1
      %p285 = scmp.eq.s32.totalorder %s43, 1
      %p286 = scmp.ne.s32.totalorder %s281, %s283
      %p287 = scmp.eq.s32.totalorder %s43, 0
      %p288 = por %p286, %p287
      %p289 = scmp.ne.s32.totalorder %s281, %s283
      %p290 = scmp.eq.s32.totalorder %s48, 1
      %p291 = por %p289, %p290
      %p292 = scmp.ne.s32.totalorder %s283, %s284
      %p293 = scmp.eq.s32.totalorder %s48, 0
      %p294 = por %p292, %p293
      %p295 = scmp.ne.s32.totalorder %s283, %s284
      %p296 = scmp.eq.s32.totalorder %s49, 1
      %p297 = por %p295, %p296
      %p299 = scmp.ne.s32.totalorder %s284, %s298
      %p300 = scmp.eq.s32.totalorder %s49, 0
      %p301 = por %p299, %p300
      %s303 = sadd.s32 %s302, 1
      %p306 = scmp.eq.s32.totalorder %s43, 1
      %p307 = scmp.ne.s32.totalorder %s302, %s304
      %p308 = scmp.eq.s32.totalorder %s43, 0
      %p309 = por %p307, %p308
      %p310 = scmp.ne.s32.totalorder %s302, %s304
      %p311 = scmp.eq.s32.totalorder %s48, 1
      %p312 = por %p310, %p311
      %p313 = scmp.ne.s32.totalorder %s304, %s305
      %p314 = scmp.eq.s32.totalorder %s48, 0
      %p315 = por %p313, %p314
      %p316 = scmp.ne.s32.totalorder %s304, %s305
      %p317 = scmp.eq.s32.totalorder %s49, 1
      %p318 = por %p316, %p317
      %p320 = scmp.ne.s32.totalorder %s305, %s319
      %p321 = scmp.eq.s32.totalorder %s49, 0
      %p322 = por %p320, %p321
      %s324 = sadd.s32 %s323, 1
      %p327 = scmp.eq.s32.totalorder %s43, 1
      %p328 = scmp.ne.s32.totalorder %s323, %s325
      %p329 = scmp.eq.s32.totalorder %s43, 0
      %p330 = por %p328, %p329
      %p331 = scmp.ne.s32.totalorder %s323, %s325
      %p332 = scmp.eq.s32.totalorder %s48, 1
      %p333 = por %p331, %p332
      %p334 = scmp.ne.s32.totalorder %s325, %s326
      %p335 = scmp.eq.s32.totalorder %s48, 0
      %p336 = por %p334, %p335
      %p337 = scmp.ne.s32.totalorder %s325, %s326
      %p338 = scmp.eq.s32.totalorder %s49, 1
      %p339 = por %p337, %p338
      %p341 = scmp.ne.s32.totalorder %s326, %s340
      %p342 = scmp.eq.s32.totalorder %s49, 0
      %p343 = por %p341, %p342
      %s345 = sadd.s32 %s344, 1
      %p348 = scmp.eq.s32.totalorder %s43, 1
      %p349 = scmp.ne.s32.totalorder %s344, %s346
      %p350 = scmp.eq.s32.totalorder %s43, 0
      %p351 = por %p349, %p350
      %p352 = scmp.ne.s32.totalorder %s344, %s346
      %p353 = scmp.eq.s32.totalorder %s48, 1
      %p354 = por %p352, %p353
      %p355 = scmp.ne.s32.totalorder %s346, %s347
      %p356 = scmp.eq.s32.totalorder %s48, 0
      %p357 = por %p355, %p356
      %p358 = scmp.ne.s32.totalorder %s346, %s347
      %p359 = scmp.eq.s32.totalorder %s49, 1
      %p360 = por %p358, %p359
      %p362 = scmp.ne.s32.totalorder %s347, %s361
      %p363 = scmp.eq.s32.totalorder %s49, 0
      %p364 = por %p362, %p363
      %s366 = sadd.s32 %s365, 1
      %p369 = scmp.eq.s32.totalorder %s43, 1
      %p370 = scmp.ne.s32.totalorder %s365, %s367
      %p371 = scmp.eq.s32.totalorder %s43, 0
      %p372 = por %p370, %p371
      %p373 = scmp.ne.s32.totalorder %s365, %s367
      %p374 = scmp.eq.s32.totalorder %s48, 1
      %p375 = por %p373, %p374
      %p376 = scmp.ne.s32.totalorder %s367, %s368
      %p377 = scmp.eq.s32.totalorder %s48, 0
      %p378 = por %p376, %p377
      %p379 = scmp.ne.s32.totalorder %s367, %s368
      %p380 = scmp.eq.s32.totalorder %s49, 1
      %p381 = por %p379, %p380
      %p383 = scmp.ne.s32.totalorder %s368, %s382
      %p384 = scmp.eq.s32.totalorder %s49, 0
      %p385 = por %p383, %p384
      %s387 = sadd.s32 %s386, 1
      %p390 = scmp.eq.s32.totalorder %s43, 1
      %p391 = scmp.ne.s32.totalorder %s386, %s388
      %p392 = scmp.eq.s32.totalorder %s43, 0
      %p393 = por %p391, %p392
      %p394 = scmp.ne.s32.totalorder %s386, %s388
      %p395 = scmp.eq.s32.totalorder %s48, 1
      %p396 = por %p394, %p395
      %p397 = scmp.ne.s32.totalorder %s388, %s389
      %p398 = scmp.eq.s32.totalorder %s48, 0
      %p399 = por %p397, %p398
      %p400 = scmp.ne.s32.totalorder %s388, %s389
      %p401 = scmp.eq.s32.totalorder %s49, 1
      %p402 = por %p400, %p401
      %p404 = scmp.ne.s32.totalorder %s389, %s403
      %p405 = scmp.eq.s32.totalorder %s49, 0
      %p406 = por %p404, %p405
      %s408 = sadd.s32 %s407, 1
      %p411 = scmp.eq.s32.totalorder %s43, 1
      %p412 = scmp.ne.s32.totalorder %s407, %s409
      %p413 = scmp.eq.s32.totalorder %s43, 0
      %p414 = por %p412, %p413
      %p415 = scmp.ne.s32.totalorder %s407, %s409
      %p416 = scmp.eq.s32.totalorder %s48, 1
      %p417 = por %p415, %p416
      %p418 = scmp.ne.s32.totalorder %s409, %s410
      %p419 = scmp.eq.s32.totalorder %s48, 0
      %p420 = por %p418, %p419
      %p421 = scmp.ne.s32.totalorder %s409, %s410
      %p422 = scmp.eq.s32.totalorder %s49, 1
      %p423 = por %p421, %p422
      %p425 = scmp.ne.s32.totalorder %s410, %s424
      %p426 = scmp.eq.s32.totalorder %s49, 0
      %p427 = por %p425, %p426
      %s429 = sadd.s32 %s428, 1
      %p432 = scmp.eq.s32.totalorder %s43, 1
      %p433 = scmp.ne.s32.totalorder %s428, %s430
      %p434 = scmp.eq.s32.totalorder %s43, 0
      %p435 = por %p433, %p434
      %p436 = scmp.ne.s32.totalorder %s428, %s430
      %p437 = scmp.eq.s32.totalorder %s48, 1
      %p438 = por %p436, %p437
      %p439 = scmp.ne.s32.totalorder %s430, %s431
      %p440 = scmp.eq.s32.totalorder %s48, 0
      %p441 = por %p439, %p440
      %p442 = scmp.ne.s32.totalorder %s430, %s431
      %p443 = scmp.eq.s32.totalorder %s49, 1
      %p444 = por %p442, %p443
      %p446 = scmp.ne.s32.totalorder %s431, %s445
      %p447 = scmp.eq.s32.totalorder %s49, 0
      %p448 = por %p446, %p447
      %s450 = sadd.s32 %s449, 1
      %p453 = scmp.eq.s32.totalorder %s43, 1
      %p454 = scmp.ne.s32.totalorder %s449, %s451
      %p455 = scmp.eq.s32.totalorder %s43, 0
      %p456 = por %p454, %p455
      %p457 = scmp.ne.s32.totalorder %s449, %s451
      %p458 = scmp.eq.s32.totalorder %s48, 1
      %p459 = por %p457, %p458
      %p460 = scmp.ne.s32.totalorder %s451, %s452
      %p461 = scmp.eq.s32.totalorder %s48, 0
      %p462 = por %p460, %p461
      %p463 = scmp.ne.s32.totalorder %s451, %s452
      %p464 = scmp.eq.s32.totalorder %s49, 1
      %p465 = por %p463, %p464
      %p467 = scmp.ne.s32.totalorder %s452, %s466
      %p468 = scmp.eq.s32.totalorder %s49, 0
      %p469 = por %p467, %p468
      %s471 = sadd.s32 %s470, 1
      %p474 = scmp.eq.s32.totalorder %s43, 1
      %p475 = scmp.ne.s32.totalorder %s470, %s472
      %p476 = scmp.eq.s32.totalorder %s43, 0
      %p477 = por %p475, %p476
      %p478 = scmp.ne.s32.totalorder %s470, %s472
      %p479 = scmp.eq.s32.totalorder %s48, 1
      %p480 = por %p478, %p479
      %p481 = scmp.ne.s32.totalorder %s472, %s473
      %p482 = scmp.eq.s32.totalorder %s48, 0
      %p483 = por %p481, %p482
      %p484 = scmp.ne.s32.totalorder %s472, %s473
      %p485 = scmp.eq.s32.totalorder %s49, 1
      %p486 = por %p484, %p485
      %p488 = scmp.ne.s32.totalorder %s473, %s487
      %p489 = scmp.eq.s32.totalorder %s49, 0
      %p490 = por %p488, %p489
      %s492 = sadd.s32 %s491, 1
      %p495 = scmp.eq.s32.totalorder %s43, 1
      %p496 = scmp.ne.s32.totalorder %s491, %s493
      %p497 = scmp.eq.s32.totalorder %s43, 0
      %p498 = por %p496, %p497
      %p499 = scmp.ne.s32.totalorder %s491, %s493
      %p500 = scmp.eq.s32.totalorder %s48, 1
      %p501 = por %p499, %p500
      %p502 = scmp.ne.s32.totalorder %s493, %s494
      %p503 = scmp.eq.s32.totalorder %s48, 0
      %p504 = por %p502, %p503
      %p505 = scmp.ne.s32.totalorder %s493, %s494
      %p506 = scmp.eq.s32.totalorder %s49, 1
      %p507 = por %p505, %p506
      %p509 = scmp.ne.s32.totalorder %s494, %s508
      %p510 = scmp.eq.s32.totalorder %s49, 0
      %p511 = por %p509, %p510
      %s513 = sadd.s32 %s512, 1
      %p516 = scmp.eq.s32.totalorder %s43, 1
      %p517 = scmp.ne.s32.totalorder %s512, %s514
      %p518 = scmp.eq.s32.totalorder %s43, 0
      %p519 = por %p517, %p518
      %p520 = scmp.ne.s32.totalorder %s512, %s514
      %p521 = scmp.eq.s32.totalorder %s48, 1
      %p522 = por %p520, %p521
      %p523 = scmp.ne.s32.totalorder %s514, %s515
      %p524 = scmp.eq.s32.totalorder %s48, 0
      %p525 = por %p523, %p524
      %p526 = scmp.ne.s32.totalorder %s514, %s515
      %p527 = scmp.eq.s32.totalorder %s49, 1
      %p528 = por %p526, %p527
      %p530 = scmp.ne.s32.totalorder %s515, %s529
      %p531 = scmp.eq.s32.totalorder %s49, 0
      %p532 = por %p530, %p531
      %s534 = sadd.s32 %s533, 1
      %p537 = scmp.eq.s32.totalorder %s43, 1
      %p538 = scmp.ne.s32.totalorder %s533, %s535
      %p539 = scmp.eq.s32.totalorder %s43, 0
      %p540 = por %p538, %p539
      %p541 = scmp.ne.s32.totalorder %s533, %s535
      %p542 = scmp.eq.s32.totalorder %s48, 1
      %p543 = por %p541, %p542
      %p544 = scmp.ne.s32.totalorder %s535, %s536
      %p545 = scmp.eq.s32.totalorder %s48, 0
      %p546 = por %p544, %p545
      %p547 = scmp.ne.s32.totalorder %s535, %s536
      %p548 = scmp.eq.s32.totalorder %s49, 1
      %p549 = por %p547, %p548
      %p551 = scmp.ne.s32.totalorder %s536, %s550
      %p552 = scmp.eq.s32.totalorder %s49, 0
      %p553 = por %p551, %p552
      %s555 = sadd.s32 %s554, 1
      %p558 = scmp.eq.s32.totalorder %s43, 1
      %p559 = scmp.ne.s32.totalorder %s554, %s556
      %p560 = scmp.eq.s32.totalorder %s43, 0
      %p561 = por %p559, %p560
      %p562 = scmp.ne.s32.totalorder %s554, %s556
      %p563 = scmp.eq.s32.totalorder %s48, 1
      %p564 = por %p562, %p563
      %p565 = scmp.ne.s32.totalorder %s556, %s557
      %p566 = scmp.eq.s32.totalorder %s48, 0
      %p567 = por %p565, %p566
      %p568 = scmp.ne.s32.totalorder %s556, %s557
      %p569 = scmp.eq.s32.totalorder %s49, 1
      %p570 = por %p568, %p569
      %p572 = scmp.ne.s32.totalorder %s557, %s571
      %p573 = scmp.eq.s32.totalorder %s49, 0
      %p574 = por %p572, %p573
      %s575 = ssub.s32 %s43, %s50
      %p576 = scmp.eq.s32.totalorder %s575, 0
      %s578 = sadd.s32 %s577, 1
      %s579 = scalar_select %p576, %s577, %s578
      %p582 = pneg %p576
      %p583 = scmp.eq.s32.totalorder %s43, 1
      %p584 = por %p582, %p583
      %p585 = scmp.ne.s32.totalorder %s577, %s580
      %p586 = scmp.eq.s32.totalorder %s43, 0
      %p587 = por %p585, %p586
      %p588 = scmp.ne.s32.totalorder %s577, %s580
      %p589 = scmp.eq.s32.totalorder %s48, 1
      %p590 = por %p588, %p589
      %p591 = scmp.ne.s32.totalorder %s580, %s581
      %p592 = scmp.eq.s32.totalorder %s48, 0
      %p593 = por %p591, %p592
      %p594 = scmp.ne.s32.totalorder %s580, %s581
      %p595 = scmp.eq.s32.totalorder %s49, 1
      %p596 = por %p594, %p595
      %p598 = scmp.ne.s32.totalorder %s581, %s597
      %p599 = scmp.eq.s32.totalorder %s49, 0
      %p600 = por %p598, %p599
      %p601 = scmp.le.s32.totalorder 1, %s43
      %p602 = scmp.lt.s32.totalorder %s43, 3
      %p603 = pnand %p601, %p602
      %p604 = pneg %p603
      // Predicated region
      $region9: #{tpu_custom_call.1} parent=5 // pred_check
        _
      $region10: #{tpu_custom_call.1} parent=5 // pred_check_branch
        %606 = sbr.rel (%p603) target = $region12
      $region11: #{tpu_custom_call.1} parent=5 // pred_region
        %s607 = ssub.s32 %s43, 1
        // Predicated region
        $region13: #{tpu_custom_call.1} parent=11 // pred_check
          %p608 = pneg %p168
        $region14: #{tpu_custom_call.1} parent=11 // pred_check_branch
          %610 = sbr.rel (%p608) target = $region16
        $region15: #{tpu_custom_call.1} parent=11 // pred_region
          _
        $region16: #{tpu_custom_call.1} parent=11 // pred_fallthru
          _
        // Predicated region
        $region17: #{tpu_custom_call.1} parent=11 // pred_check
          %p611 = pneg %p189
        $region18: #{tpu_custom_call.1} parent=11 // pred_check_branch
          %613 = sbr.rel (%p611) target = $region20
        $region19: #{tpu_custom_call.1} parent=11 // pred_region
          _
        $region20: #{tpu_custom_call.1} parent=11 // pred_fallthru
          _
        // Predicated region
        $region21: #{tpu_custom_call.1} parent=11 // pred_check
          %p614 = pneg %p210
        $region22: #{tpu_custom_call.1} parent=11 // pred_check_branch
          %616 = sbr.rel (%p614) target = $region24
        $region23: #{tpu_custom_call.1} parent=11 // pred_region
          _
        $region24: #{tpu_custom_call.1} parent=11 // pred_fallthru
          _
        // Predicated region
        $region25: #{tpu_custom_call.1} parent=11 // pred_check
          %p617 = pneg %p231
        $region26: #{tpu_custom_call.1} parent=11 // pred_check_branch
          %619 = sbr.rel (%p617) target = $region28
        $region27: #{tpu_custom_call.1} parent=11 // pred_region
          _
        $region28: #{tpu_custom_call.1} parent=11 // pred_fallthru
          _
        // Predicated region
        $region29: #{tpu_custom_call.1} parent=11 // pred_check
          %p620 = pneg %p252
        $region30: #{tpu_custom_call.1} parent=11 // pred_check_branch
          %622 = sbr.rel (%p620) target = $region32
        $region31: #{tpu_custom_call.1} parent=11 // pred_region
          _
        $region32: #{tpu_custom_call.1} parent=11 // pred_fallthru
          _
        // Predicated region
        $region33: #{tpu_custom_call.1} parent=11 // pred_check
          %p623 = pneg %p273
        $region34: #{tpu_custom_call.1} parent=11 // pred_check_branch
          %625 = sbr.rel (%p623) target = $region36
        $region35: #{tpu_custom_call.1} parent=11 // pred_region
          _
        $region36: #{tpu_custom_call.1} parent=11 // pred_fallthru
          _
        // Predicated region
        $region37: #{tpu_custom_call.1} parent=11 // pred_check
          %p626 = pneg %p294
        $region38: #{tpu_custom_call.1} parent=11 // pred_check_branch
          %628 = sbr.rel (%p626) target = $region40
        $region39: #{tpu_custom_call.1} parent=11 // pred_region
          _
        $region40: #{tpu_custom_call.1} parent=11 // pred_fallthru
          _
        // Predicated region
        $region41: #{tpu_custom_call.1} parent=11 // pred_check
          %p629 = pneg %p315
        $region42: #{tpu_custom_call.1} parent=11 // pred_check_branch
          %631 = sbr.rel (%p629) target = $region44
        $region43: #{tpu_custom_call.1} parent=11 // pred_region
          _
        $region44: #{tpu_custom_call.1} parent=11 // pred_fallthru
          _
        // Predicated region
        $region45: #{tpu_custom_call.1} parent=11 // pred_check
          %p632 = pneg %p336
        $region46: #{tpu_custom_call.1} parent=11 // pred_check_branch
          %634 = sbr.rel (%p632) target = $region48
        $region47: #{tpu_custom_call.1} parent=11 // pred_region
          _
        $region48: #{tpu_custom_call.1} parent=11 // pred_fallthru
          _
        // Predicated region
        $region49: #{tpu_custom_call.1} parent=11 // pred_check
          %p635 = pneg %p357
        $region50: #{tpu_custom_call.1} parent=11 // pred_check_branch
          %637 = sbr.rel (%p635) target = $region52
        $region51: #{tpu_custom_call.1} parent=11 // pred_region
          _
        $region52: #{tpu_custom_call.1} parent=11 // pred_fallthru
          _
        // Predicated region
        $region53: #{tpu_custom_call.1} parent=11 // pred_check
          %p638 = pneg %p378
        $region54: #{tpu_custom_call.1} parent=11 // pred_check_branch
          %640 = sbr.rel (%p638) target = $region56
        $region55: #{tpu_custom_call.1} parent=11 // pred_region
          %642 = vsyncadd [#allocation9], 0
          %s643 = sshll.u32 %s14, 4
          %s644 = int_to_ptr.hbm [resolvable:$true] %s643
          %s645 = sshll.u32 [#allocation10], 4
          %s646 = int_to_ptr.vmem [resolvable:$true] %s645
          %651 = dma.hbm_to_vmem [thread:$0]  %s644, 512, %s646, [#allocation9], 128, 128, 8
        $region56: #{tpu_custom_call.1} parent=11 // pred_fallthru
          _
        // Predicated region
        $region57: #{tpu_custom_call.1} parent=11 // pred_check
          %p652 = pneg %p399
        $region58: #{tpu_custom_call.1} parent=11 // pred_check_branch
          %654 = sbr.rel (%p652) target = $region60
        $region59: #{tpu_custom_call.1} parent=11 // pred_region
          _
        $region60: #{tpu_custom_call.1} parent=11 // pred_fallthru
          _
        // Predicated region
        $region61: #{tpu_custom_call.1} parent=11 // pred_check
          %p655 = pneg %p420
        $region62: #{tpu_custom_call.1} parent=11 // pred_check_branch
          %657 = sbr.rel (%p655) target = $region64
        $region63: #{tpu_custom_call.1} parent=11 // pred_region
          %659 = vsyncadd [#allocation12], 0
          %s660 = sshll.u32 %s16, 4
          %s661 = int_to_ptr.hbm [resolvable:$true] %s660
          %s662 = sshll.u32 [#allocation11], 4
          %s663 = int_to_ptr.vmem [resolvable:$true] %s662
          %668 = dma.hbm_to_vmem [thread:$0]  %s661, 512, %s663, [#allocation12], 128, 128, 8
        $region64: #{tpu_custom_call.1} parent=11 // pred_fallthru
          _
        // Predicated region
        $region65: #{tpu_custom_call.1} parent=11 // pred_check
          %p669 = pneg %p441
        $region66: #{tpu_custom_call.1} parent=11 // pred_check_branch
          %671 = sbr.rel (%p669) target = $region68
        $region67: #{tpu_custom_call.1} parent=11 // pred_region
          _
        $region68: #{tpu_custom_call.1} parent=11 // pred_fallthru
          _
        // Predicated region
        $region69: #{tpu_custom_call.1} parent=11 // pred_check
          %p672 = pneg %p462
        $region70: #{tpu_custom_call.1} parent=11 // pred_check_branch
          %674 = sbr.rel (%p672) target = $region72
        $region71: #{tpu_custom_call.1} parent=11 // pred_region
          _
        $region72: #{tpu_custom_call.1} parent=11 // pred_fallthru
          _
        // Predicated region
        $region73: #{tpu_custom_call.1} parent=11 // pred_check
          %p675 = pneg %p483
        $region74: #{tpu_custom_call.1} parent=11 // pred_check_branch
          %677 = sbr.rel (%p675) target = $region76
        $region75: #{tpu_custom_call.1} parent=11 // pred_region
          _
        $region76: #{tpu_custom_call.1} parent=11 // pred_fallthru
          _
        // Predicated region
        $region77: #{tpu_custom_call.1} parent=11 // pred_check
          %p678 = pneg %p504
        $region78: #{tpu_custom_call.1} parent=11 // pred_check_branch
          %680 = sbr.rel (%p678) target = $region80
        $region79: #{tpu_custom_call.1} parent=11 // pred_region
          %682 = vsyncadd [#allocation12], 0
          %s683 = sshll.u32 %s20, 4
          %s684 = int_to_ptr.hbm [resolvable:$true] %s683
          %s685 = sshll.u32 [#allocation13], 4
          %s686 = int_to_ptr.vmem [resolvable:$true] %s685
          %691 = dma.hbm_to_vmem [thread:$0]  %s684, 512, %s686, [#allocation12], 128, 128, 8
        $region80: #{tpu_custom_call.1} parent=11 // pred_fallthru
          _
        // Predicated region
        $region81: #{tpu_custom_call.1} parent=11 // pred_check
          %p692 = pneg %p525
        $region82: #{tpu_custom_call.1} parent=11 // pred_check_branch
          %694 = sbr.rel (%p692) target = $region84
        $region83: #{tpu_custom_call.1} parent=11 // pred_region
          _
        $region84: #{tpu_custom_call.1} parent=11 // pred_fallthru
          _
        // Predicated region
        $region85: #{tpu_custom_call.1} parent=11 // pred_check
          %p695 = pneg %p546
        $region86: #{tpu_custom_call.1} parent=11 // pred_check_branch
          %697 = sbr.rel (%p695) target = $region88
        $region87: #{tpu_custom_call.1} parent=11 // pred_region
          _
        $region88: #{tpu_custom_call.1} parent=11 // pred_fallthru
          _
        // Predicated region
        $region89: #{tpu_custom_call.1} parent=11 // pred_check
          %p698 = pneg %p567
        $region90: #{tpu_custom_call.1} parent=11 // pred_check_branch
          %700 = sbr.rel (%p698) target = $region92
        $region91: #{tpu_custom_call.1} parent=11 // pred_region
          _
        $region92: #{tpu_custom_call.1} parent=11 // pred_fallthru
          _
      $region12: #{tpu_custom_call.1} parent=5 // pred_fallthru
        _
      %p701 = scmp.lt.s32.totalorder %s43, 2
      // Predicated region
      $region93: #{tpu_custom_call.1} parent=5 // pred_check
        %p702 = pneg %p701
      $region94: #{tpu_custom_call.1} parent=5 // pred_check_branch
        %704 = sbr.rel (%p702) target = $region96
      $region95: #{tpu_custom_call.1} parent=5 // pred_region
        // Predicated region
        $region97: #{tpu_custom_call.1} parent=95 // pred_check
          %p705 = pneg %p63
        $region98: #{tpu_custom_call.1} parent=95 // pred_check_branch
          %707 = sbr.rel (%p705) target = $region100
        $region99: #{tpu_custom_call.1} parent=95 // pred_region
          %s708 = sand.u32 %s53, 1
          %s709 = scalar_lea.sflag [#allocation3], %s708
          %s710 = sand.u32 %s53, 1
          %s711 = smul.addr %s710, 8
          %s712 = scalar_lea.vmem [#allocation2], %s711
          %714 = vsyncadd %s709, 0
          %s715 = smul.addr %s43, 8
          %s716 = scalar_lea.hbm %s0, %s715
          %s718 = sshll.u32 %s716, 4
          %s719 = int_to_ptr.hbm [resolvable:$true] %s718
          %s720 = sshll.u32 %s712, 4
          %s721 = int_to_ptr.vmem [resolvable:$true] %s720
          %723 = dma.hbm_to_vmem [thread:$0]  %s719, 128, %s721, %s709
        $region100: #{tpu_custom_call.1} parent=95 // pred_fallthru
          _
        // Predicated region
        $region101: #{tpu_custom_call.1} parent=95 // pred_check
          %p724 = pneg %p89
        $region102: #{tpu_custom_call.1} parent=95 // pred_check_branch
          %726 = sbr.rel (%p724) target = $region104
        $region103: #{tpu_custom_call.1} parent=95 // pred_region
          %s727 = sand.u32 %s43, 1
          %s728 = scalar_lea.sflag [#allocation6], %s727
          %s729 = sand.u32 %s79, 1
          %s730 = smul.addr %s729, 8
          %s731 = scalar_lea.vmem [#allocation5], %s730
          %733 = vsyncadd %s728, 0
          %s734 = smul.addr %s43, 8
          %s735 = scalar_lea.hbm %s1, %s734
          %s737 = sshll.u32 %s735, 4
          %s738 = int_to_ptr.hbm [resolvable:$true] %s737
          %s739 = sshll.u32 %s731, 4
          %s740 = int_to_ptr.vmem [resolvable:$true] %s739
          %742 = dma.hbm_to_vmem [thread:$0]  %s738, 128, %s740, %s728
        $region104: #{tpu_custom_call.1} parent=95 // pred_fallthru
          _
        // Predicated region
        $region105: #{tpu_custom_call.1} parent=95 // pred_check
          %p743 = pneg %p115
        $region106: #{tpu_custom_call.1} parent=95 // pred_check_branch
          %745 = sbr.rel (%p743) target = $region108
        $region107: #{tpu_custom_call.1} parent=95 // pred_region
          %s746 = sand.u32 %s43, 1
          %s747 = scalar_lea.sflag [#allocation6], %s746
          %s748 = sand.u32 %s105, 1
          %s749 = smul.addr %s748, 8
          %s750 = scalar_lea.vmem [#allocation7], %s749
          %752 = vsyncadd %s747, 0
          %s753 = smul.addr %s43, 8
          %s754 = scalar_lea.hbm %s2, %s753
          %s756 = sshll.u32 %s754, 4
          %s757 = int_to_ptr.hbm [resolvable:$true] %s756
          %s758 = sshll.u32 %s750, 4
          %s759 = int_to_ptr.vmem [resolvable:$true] %s758
          %761 = dma.hbm_to_vmem [thread:$0]  %s757, 128, %s759, %s747
        $region108: #{tpu_custom_call.1} parent=95 // pred_fallthru
          _
        // Predicated region
        $region109: #{tpu_custom_call.1} parent=95 // pred_check
          %p762 = pneg %p141
        $region110: #{tpu_custom_call.1} parent=95 // pred_check_branch
          %764 = sbr.rel (%p762) target = $region112
        $region111: #{tpu_custom_call.1} parent=95 // pred_region
          %s765 = sand.u32 %s43, 1
          %s766 = scalar_lea.sflag [#allocation9], %s765
          %s767 = sand.u32 %s131, 1
          %s768 = smul.addr %s767, 8
          %s769 = scalar_lea.vmem [#allocation8], %s768
          %771 = vsyncadd %s766, 0
          %s772 = smul.addr %s43, 8
          %s773 = scalar_lea.hbm %s3, %s772
          %s775 = sshll.u32 %s773, 4
          %s776 = int_to_ptr.hbm [resolvable:$true] %s775
          %s777 = sshll.u32 %s769, 4
          %s778 = int_to_ptr.vmem [resolvable:$true] %s777
          %780 = dma.hbm_to_vmem [thread:$0]  %s776, 128, %s778, %s766
        $region112: #{tpu_custom_call.1} parent=95 // pred_fallthru
          _
      $region96: #{tpu_custom_call.1} parent=5 // pred_fallthru
        _
      %p781 = scmp.le.s32.totalorder 1, %s43
      %p782 = scmp.lt.s32.totalorder %s43, 3
      %p783 = pnand %p781, %p782
      %p784 = pneg %p783
      // Predicated region
      $region113: #{tpu_custom_call.1} parent=5 // pred_check
        _
      $region114: #{tpu_custom_call.1} parent=5 // pred_check_branch
        %786 = sbr.rel (%p783) target = $region116
      $region115: #{tpu_custom_call.1} parent=5 // pred_region
        %s787 = ssub.s32 %s43, 1
        %s788 = sand.u32 %s56, 1
        %s789 = scalar_lea.sflag [#allocation3], %s788
        %s790 = sand.u32 %s56, 1
        %s791 = smul.addr %s790, 8
        %s792 = scalar_lea.vmem [#allocation2], %s791
        // Predicated region
        $region117: #{tpu_custom_call.1} parent=115 // pred_check
          %p793 = pneg %p69
        $region118: #{tpu_custom_call.1} parent=115 // pred_check_branch
          %795 = sbr.rel (%p793) target = $region120
        $region119: #{tpu_custom_call.1} parent=115 // pred_region
          %797 = dma.done %s789, 128
        $region120: #{tpu_custom_call.1} parent=115 // pred_fallthru
          _
        %s798 = sand.u32 %s48, 1
        %s799 = scalar_lea.sflag [#allocation6], %s798
        %s800 = sand.u32 %s82, 1
        %s801 = smul.addr %s800, 8
        %s802 = scalar_lea.vmem [#allocation5], %s801
        // Predicated region
        $region121: #{tpu_custom_call.1} parent=115 // pred_check
          %p803 = pneg %p95
        $region122: #{tpu_custom_call.1} parent=115 // pred_check_branch
          %805 = sbr.rel (%p803) target = $region124
        $region123: #{tpu_custom_call.1} parent=115 // pred_region
          %807 = dma.done %s799, 128
        $region124: #{tpu_custom_call.1} parent=115 // pred_fallthru
          _
        %s808 = sand.u32 %s48, 1
        %s809 = scalar_lea.sflag [#allocation6], %s808
        %s810 = sand.u32 %s108, 1
        %s811 = smul.addr %s810, 8
        %s812 = scalar_lea.vmem [#allocation7], %s811
        // Predicated region
        $region125: #{tpu_custom_call.1} parent=115 // pred_check
          %p813 = pneg %p121
        $region126: #{tpu_custom_call.1} parent=115 // pred_check_branch
          %815 = sbr.rel (%p813) target = $region128
        $region127: #{tpu_custom_call.1} parent=115 // pred_region
          %817 = dma.done %s809, 128
        $region128: #{tpu_custom_call.1} parent=115 // pred_fallthru
          _
        %s818 = sand.u32 %s48, 1
        %s819 = scalar_lea.sflag [#allocation9], %s818
        %s820 = sand.u32 %s134, 1
        %s821 = smul.addr %s820, 8
        %s822 = scalar_lea.vmem [#allocation8], %s821
        // Predicated region
        $region129: #{tpu_custom_call.1} parent=115 // pred_check
          %p823 = pneg %p147
        $region130: #{tpu_custom_call.1} parent=115 // pred_check_branch
          %825 = sbr.rel (%p823) target = $region132
        $region131: #{tpu_custom_call.1} parent=115 // pred_region
          %827 = dma.done %s819, 128
        $region132: #{tpu_custom_call.1} parent=115 // pred_fallthru
          _
        // Predicated region
        $region133: #{tpu_custom_call.1} parent=115 // pred_check
          %p828 = pneg %p378
        $region134: #{tpu_custom_call.1} parent=115 // pred_check_branch
          %830 = sbr.rel (%p828) target = $region136
        $region135: #{tpu_custom_call.1} parent=115 // pred_region
          %832 = dma.done [#allocation9], 512
        $region136: #{tpu_custom_call.1} parent=115 // pred_fallthru
          _
        // Predicated region
        $region137: #{tpu_custom_call.1} parent=115 // pred_check
          %p833 = pneg %p420
        $region138: #{tpu_custom_call.1} parent=115 // pred_check_branch
          %835 = sbr.rel (%p833) target = $region140
        $region139: #{tpu_custom_call.1} parent=115 // pred_region
          %837 = dma.done [#allocation12], 512
        $region140: #{tpu_custom_call.1} parent=115 // pred_fallthru
          _
        // Predicated region
        $region141: #{tpu_custom_call.1} parent=115 // pred_check
          %p838 = pneg %p504
        $region142: #{tpu_custom_call.1} parent=115 // pred_check_branch
          %840 = sbr.rel (%p838) target = $region144
        $region143: #{tpu_custom_call.1} parent=115 // pred_region
          %842 = dma.done [#allocation12], 512
        $region144: #{tpu_custom_call.1} parent=115 // pred_fallthru
          _
        %s843 = sand.u32 %s56, 1
        %s844 = scalar_lea.sflag [#allocation3], %s843
        %s845 = sand.u32 %s56, 1
        %s846 = smul.addr %s845, 8
        %s847 = scalar_lea.vmem [#allocation2], %s846
        %p848 = pneg %p69
        %p849 = pneg %p66
        %s850 = sand.u32 %s48, 1
        %s851 = scalar_lea.sflag [#allocation6], %s850
        %s852 = sand.u32 %s82, 1
        %s853 = smul.addr %s852, 8
        %s854 = scalar_lea.vmem [#allocation5], %s853
        %p855 = pneg %p95
        %p856 = pneg %p92
        %s857 = sand.u32 %s48, 1
        %s858 = scalar_lea.sflag [#allocation6], %s857
        %s859 = sand.u32 %s108, 1
        %s860 = smul.addr %s859, 8
        %s861 = scalar_lea.vmem [#allocation7], %s860
        %p862 = pneg %p121
        %p863 = pneg %p118
        %s864 = sand.u32 %s48, 1
        %s865 = scalar_lea.sflag [#allocation9], %s864
        %s866 = sand.u32 %s134, 1
        %s867 = smul.addr %s866, 8
        %s868 = scalar_lea.vmem [#allocation8], %s867
        %p869 = pneg %p147
        %p870 = pneg %p144
        %p871 = pneg %p168
        %p872 = pneg %p165
        %p873 = pneg %p189
        %p874 = pneg %p186
        %p875 = pneg %p210
        %p876 = pneg %p207
        %p877 = pneg %p231
        %p878 = pneg %p228
        %p879 = pneg %p252
        %p880 = pneg %p249
        %p881 = pneg %p273
        %p882 = pneg %p270
        %p883 = pneg %p294
        %p884 = pneg %p291
        %p885 = pneg %p315
        %p886 = pneg %p312
        %p887 = pneg %p336
        %p888 = pneg %p333
        %p889 = pneg %p357
        %p890 = pneg %p354
        %p891 = pneg %p378
        %p892 = pneg %p375
        %p893 = pneg %p399
        %p894 = pneg %p396
        %p895 = pneg %p420
        %p896 = pneg %p417
        %p897 = pneg %p441
        %p898 = pneg %p438
        %p899 = pneg %p462
        %p900 = pneg %p459
        %p901 = pneg %p483
        %p902 = pneg %p480
        %p903 = pneg %p504
        %p904 = pneg %p501
        %p905 = pneg %p525
        %p906 = pneg %p522
        %p907 = pneg %p546
        %p908 = pneg %p543
        %p909 = pneg %p567
        %p910 = pneg %p564
        %p911 = pneg %p593
        %p912 = pneg %p590
        %s913 = sand.u32 %s580, 1
        %s914 = scalar_lea.sflag [#allocation4], %s913
        %s915 = sand.u32 %s580, 1
        %s916 = smul.addr %s915, 8
        %s917 = scalar_lea.vmem [#allocation14], %s916
        %v918 = vld [vmem:[%s792] sm:$0xff]
        %v919 = vld [vmem:[%s4] sm:$0x1]
        %v920 = vld [vmem:[%s5] sm:$0x1]
        %vm921 = vcmask 261120
        %v922 = vsel %vm921, %v918, 0.0
        %923 = vadd.xlane.f32.xlu0 %v922
        %v924 = vpop.xlane.xlu0 %923
        %v925 = vrcp.pop 32.0
        %v926 = vmul.f32 32.0, %v925
        %v927 = vsub.f32 1.0, %v926
        %v928 = vmul.f32 %v925, %v927
        %v929 = vadd.f32 %v925, %v928
        %vm930 = vweird.f32 %v925
        %v931 = vsel %vm930, %v925, %v929
        %v932 = vmul.f32 %v924, %v931
        %v933 = vsub.f32 %v918, %v932
        %v934 = vmul.f32 %v933, %v933
        %v935 = vsel %vm921, %v934, 0.0
        %936 = vadd.xlane.f32.xlu0 %v935
        %v937 = vpop.xlane.xlu0 %936
        %v938 = vrcp.pop 31.0
        %v939 = vmul.f32 31.0, %v938
        %v940 = vsub.f32 1.0, %v939
        %v941 = vmul.f32 %v938, %v940
        %v942 = vadd.f32 %v938, %v941
        %vm943 = vweird.f32 %v938
        %v944 = vsel %vm943, %v938, %v942
        %v945 = vmul.f32 %v937, %v944
        %v947 = vperm.slane %v919, 0
        %v949 = vmul.f32 %v947, %v933
        %v950 = vrsqrt.pop %v945
        %v951 = vmul.f32 %v950, %v945
        %v952 = vmul.f32 %v951, %v950
        %v953 = vmul.f32 0.5, %v952
        %v954 = vsub.f32 1.5, %v953
        %v955 = vmul.f32 %v950, %v954
        %v956 = vmul.f32 %v945, %v955
        %vm957 = vcmp.eq.f32.partialorder %v945, inf
        %v958 = vsel %vm957, %v945, %v956
        %vm959 = vcmp.eq.f32.partialorder %v945, 0.0
        %v960 = vand.u32 %v945, 2147483648
        %v961 = vsel %vm959, %v960, %v958
        %v962 = vadd.f32 %v961, 1e-06
        %v963 = vrcp.pop %v962
        %v964 = vmul.f32 %v962, %v963
        %v965 = vsub.f32 1.0, %v964
        %v966 = vmul.f32 %v963, %v965
        %v967 = vadd.f32 %v963, %v966
        %vm968 = vweird.f32 %v962
        %vm969 = vweird.f32 %v963
        %vm970 = vmor %vm968, %vm969
        %v971 = vsel %vm970, %v963, %v967
        %v972 = vand.u32 2147483647, %v962
        %vm973 = vcmp.eq.f32.partialorder %v972, 8.507059e+37
        %v974 = vand.u32 %v962, 2147483648
        %v975 = vor.u32 1.1754944e-38, %v974
        %v976 = vsel %vm973, %v975, %v971
        %v977 = vmul.f32 %v949, %v976
        %v979 = vperm.slane %v920, 0
        %v981 = vadd.f32 %v977, %v979
        %v982 = vld [vmem:[%s6] sm:$0xff]
        %v983 = vld [vmem:[%s6 + $0x8] sm:$0xff]
        %v984 = vld [vmem:[%s6 + $0x10] sm:$0xff]
        %v985 = vld [vmem:[%s6 + $0x18] sm:$0xff]
        %v986 = vld [vmem:[%s7] sm:$0x1]
        %v988 = vperm.slane %v986, 0
        %v991 = vsel %vm921, %v981, 0
        %993 = vmatpush.msra.mxu0 0.0
        %994 = vmatpush.msra.mxu0 0.0
        %995 = vmatpush.msra.mxu0 0.0
        %996 = vmatpush.msra.mxu0 0.0
        %997 = vmatpush.msra.mxu0 0.0
        %998 = vmatpush.msra.mxu0 0.0
        %999 = vmatpush.msra.mxu0 0.0
        %1000 = vmatpush.msra.mxu0 0.0
        %1001 = vmatpush.msra.mxu0 0.0
        %1002 = vmatpush.msra.mxu0 0.0
        %1003 = vmatpush.msra.mxu0 0.0
        %1004 = vmatpush.msra.mxu0 0.0
        %1005 = vmatpush.msra.mxu0 %v985
        %1006 = vmatpush.msra.mxu0 %v984
        %1007 = vmatpush.msra.mxu0 %v983
        %1008 = vmatpush.msra.mxu0 %v982
        %1009 = vmatmul.f32.gmra.mxu0 %v991
        %v1010 = vpop.f32.mrf.mxu0
        %v1011 = vadd.f32 %v988, %v1010
        %1012 = vdwg.mxu0
        %v1013 = vld [vmem:[%s812] sm:$0xff]
        %v1014 = vld [vmem:[%s8] sm:$0xff]
        %v1015 = vld [vmem:[%s8 + $0x8] sm:$0xff]
        %v1016 = vld [vmem:[%s8 + $0x10] sm:$0xff]
        %v1017 = vld [vmem:[%s8 + $0x18] sm:$0xff]
        %1019 = vrot.lane.b32.xlu0 %v1011, 96
        %v1020 = vpop.permute.xlu0 %1019
        %vm1021 = vcmask 64512
        %v1022 = vsel %vm1021, %v1011, 0
        %v1024 = vsel %vm1021, %v1020, 0
        %1026 = vmatpush.xpose.msra.mxu0 0.0
        %1027 = vmatpush.xpose.msra.mxu0 0.0
        %1028 = vmatpush.xpose.msra.mxu0 0.0
        %1029 = vmatpush.xpose.msra.mxu0 0.0
        %1030 = vmatpush.xpose.msra.mxu0 0.0
        %1031 = vmatpush.xpose.msra.mxu0 0.0
        %1032 = vmatpush.xpose.msra.mxu0 0.0
        %1033 = vmatpush.xpose.msra.mxu0 0.0
        %1034 = vmatpush.xpose.msra.mxu0 0.0
        %1035 = vmatpush.xpose.msra.mxu0 0.0
        %1036 = vmatpush.xpose.msra.mxu0 0.0
        %1037 = vmatpush.xpose.msra.mxu0 0.0
        %1038 = vmatpush.xpose.msra.mxu0 0.0
        %1039 = vmatpush.xpose.msra.mxu0 0.0
        %1040 = vmatpush.xpose.msra.mxu0 0.0
        %1041 = vmatpush.xpose.msra.mxu0 %v1024
        %1042 = vmatmul.f32.gmra.mxu0 %v1022
        %v1043 = vpop.f32.mrf.mxu0
        %v1044 = vadd.f32 %v1013, %v1043
        %1045 = vdwg.mxu0
        %v1046 = vsel %vm1021, %v1044, -inf
        %1047 = vmax.xlane.f32.xlu0 %v1046
        %v1048 = vpop.xlane.xlu0 %1047
        %v1049 = vsub.f32 %v1044, %v1048
        %v1050 = vmul.f32 %v1049, 1.442695
        %v1051 = vpow.pop %v1050
        %v1052 = vsel %vm1021, %v1051, 0.0
        %1053 = vadd.xlane.f32.xlu0 %v1052
        %v1054 = vpop.xlane.xlu0 %1053
        %v1055 = vrcp.pop %v1054
        %v1056 = vmul.f32 %v1051, %v1055
        %1057 = vrot.lane.b32.xlu0 %v1011, 64
        %v1058 = vpop.permute.xlu0 %1057
        %v1061 = vsel %vm1021, %v1056, 0
        %1063 = vmatpush.msra.mxu0 0.0
        %1064 = vmatpush.msra.mxu0 0.0
        %1065 = vmatpush.msra.mxu0 0.0
        %1066 = vmatpush.msra.mxu0 0.0
        %1067 = vmatpush.msra.mxu0 0.0
        %1068 = vmatpush.msra.mxu0 0.0
        %1069 = vmatpush.msra.mxu0 0.0
        %1070 = vmatpush.msra.mxu0 0.0
        %1071 = vmatpush.msra.mxu0 0.0
        %1072 = vmatpush.msra.mxu0 0.0
        %1073 = vmatpush.msra.mxu0 0.0
        %1074 = vmatpush.msra.mxu0 0.0
        %1075 = vmatpush.msra.mxu0 0.0
        %1076 = vmatpush.msra.mxu0 0.0
        %1077 = vmatpush.msra.mxu0 0.0
        %1078 = vmatpush.msra.mxu0 %v1058
        %1079 = vmatmul.f32.gmra.mxu0 %v1061
        %v1080 = vpop.f32.mrf.mxu0
        %v1081 = vadd.f32 0.0, %v1080
        %1082 = vdwg.mxu0
        %1083 = vrot.lane.b32.xlu0 %v1011, 120
        %v1084 = vpop.permute.xlu0 %1083
        %1085 = vrot.lane.b32.xlu0 %v1011, 88
        %v1086 = vpop.permute.xlu0 %1085
        %v1087 = vsel %vm1021, %v1084, 0
        %v1089 = vsel %vm1021, %v1086, 0
        %1091 = vmatpush.xpose.msra.mxu0 0.0
        %1092 = vmatpush.xpose.msra.mxu0 0.0
        %1093 = vmatpush.xpose.msra.mxu0 0.0
        %1094 = vmatpush.xpose.msra.mxu0 0.0
        %1095 = vmatpush.xpose.msra.mxu0 0.0
        %1096 = vmatpush.xpose.msra.mxu0 0.0
        %1097 = vmatpush.xpose.msra.mxu0 0.0
        %1098 = vmatpush.xpose.msra.mxu0 0.0
        %1099 = vmatpush.xpose.msra.mxu0 0.0
        %1100 = vmatpush.xpose.msra.mxu0 0.0
        %1101 = vmatpush.xpose.msra.mxu0 0.0
        %1102 = vmatpush.xpose.msra.mxu0 0.0
        %1103 = vmatpush.xpose.msra.mxu0 0.0
        %1104 = vmatpush.xpose.msra.mxu0 0.0
        %1105 = vmatpush.xpose.msra.mxu0 0.0
        %1106 = vmatpush.xpose.msra.mxu0 %v1089
        %1107 = vmatmul.f32.gmra.mxu0 %v1087
        %v1108 = vpop.f32.mrf.mxu0
        %v1109 = vadd.f32 %v1013, %v1108
        %1110 = vdwg.mxu0
        %v1111 = vsel %vm1021, %v1109, -inf
        %1112 = vmax.xlane.f32.xlu0 %v1111
        %v1113 = vpop.xlane.xlu0 %1112
        %v1114 = vsub.f32 %v1109, %v1113
        %v1115 = vmul.f32 %v1114, 1.442695
        %v1116 = vpow.pop %v1115
        %v1117 = vsel %vm1021, %v1116, 0.0
        %1118 = vadd.xlane.f32.xlu0 %v1117
        %v1119 = vpop.xlane.xlu0 %1118
        %v1120 = vrcp.pop %v1119
        %v1121 = vmul.f32 %v1116, %v1120
        %1122 = vrot.lane.b32.xlu0 %v1011, 56
        %v1123 = vpop.permute.xlu0 %1122
        %v1126 = vsel %vm1021, %v1121, 0
        %1128 = vmatpush.msra.mxu0 0.0
        %1129 = vmatpush.msra.mxu0 0.0
        %1130 = vmatpush.msra.mxu0 0.0
        %1131 = vmatpush.msra.mxu0 0.0
        %1132 = vmatpush.msra.mxu0 0.0
        %1133 = vmatpush.msra.mxu0 0.0
        %1134 = vmatpush.msra.mxu0 0.0
        %1135 = vmatpush.msra.mxu0 0.0
        %1136 = vmatpush.msra.mxu0 0.0
        %1137 = vmatpush.msra.mxu0 0.0
        %1138 = vmatpush.msra.mxu0 0.0
        %1139 = vmatpush.msra.mxu0 0.0
        %1140 = vmatpush.msra.mxu0 0.0
        %1141 = vmatpush.msra.mxu0 0.0
        %1142 = vmatpush.msra.mxu0 0.0
        %1143 = vmatpush.msra.mxu0 %v1123
        %1144 = vmatmul.f32.gmra.mxu0 %v1126
        %v1145 = vpop.f32.mrf.mxu0
        %v1146 = vadd.f32 0.0, %v1145
        %1147 = vdwg.mxu0
        %v1149 = vsel %vm1021, %v1146, 0
        %1151 = vmatpush.msra.mxu0 0.0
        %1152 = vmatpush.msra.mxu0 0.0
        %1153 = vmatpush.msra.mxu0 0.0
        %1154 = vmatpush.msra.mxu0 0.0
        %1155 = vmatpush.msra.mxu0 0.0
        %1156 = vmatpush.msra.mxu0 0.0
        %1157 = vmatpush.msra.mxu0 0.0
        %1158 = vmatpush.msra.mxu0 0.0
        %1159 = vmatpush.msra.mxu0 0.0
        %1160 = vmatpush.msra.mxu0 0.0
        %1161 = vmatpush.msra.mxu0 0.0
        %1162 = vmatpush.msra.mxu0 0.0
        %1163 = vmatpush.msra.mxu0 0.0
        %1164 = vmatpush.msra.mxu0 0.0
        %1165 = vmatpush.msra.mxu0 0.0
        %1166 = vmatpush.msra.mxu0 %v1015
        %1167 = vmatmul.f32.gmra.mxu0 %v1149
        %v1168 = vpop.f32.mrf.mxu0
        %v1169 = vadd.f32 0.0, %v1168
        %1170 = vdwg.mxu0
        %v1172 = vsel %vm1021, %v1081, 0
        %1174 = vmatpush.msra.mxu0 0.0
        %1175 = vmatpush.msra.mxu0 0.0
        %1176 = vmatpush.msra.mxu0 0.0
        %1177 = vmatpush.msra.mxu0 0.0
        %1178 = vmatpush.msra.mxu0 0.0
        %1179 = vmatpush.msra.mxu0 0.0
        %1180 = vmatpush.msra.mxu0 0.0
        %1181 = vmatpush.msra.mxu0 0.0
        %1182 = vmatpush.msra.mxu0 0.0
        %1183 = vmatpush.msra.mxu0 0.0
        %1184 = vmatpush.msra.mxu0 0.0
        %1185 = vmatpush.msra.mxu0 0.0
        %1186 = vmatpush.msra.mxu0 0.0
        %1187 = vmatpush.msra.mxu0 0.0
        %1188 = vmatpush.msra.mxu0 0.0
        %1189 = vmatpush.msra.mxu0 %v1014
        %1190 = vmatmul.f32.gmra.mxu0 %v1172
        %v1191 = vpop.f32.mrf.mxu0
        %v1192 = vadd.f32 %v1169, %v1191
        %1193 = vdwg.mxu0
        %1194 = vrot.lane.b32.xlu0 %v1011, 112
        %v1195 = vpop.permute.xlu0 %1194
        %1196 = vrot.lane.b32.xlu0 %v1011, 80
        %v1197 = vpop.permute.xlu0 %1196
        %v1198 = vsel %vm1021, %v1195, 0
        %v1200 = vsel %vm1021, %v1197, 0
        %1202 = vmatpush.xpose.msra.mxu0 0.0
        %1203 = vmatpush.xpose.msra.mxu0 0.0
        %1204 = vmatpush.xpose.msra.mxu0 0.0
        %1205 = vmatpush.xpose.msra.mxu0 0.0
        %1206 = vmatpush.xpose.msra.mxu0 0.0
        %1207 = vmatpush.xpose.msra.mxu0 0.0
        %1208 = vmatpush.xpose.msra.mxu0 0.0
        %1209 = vmatpush.xpose.msra.mxu0 0.0
        %1210 = vmatpush.xpose.msra.mxu0 0.0
        %1211 = vmatpush.xpose.msra.mxu0 0.0
        %1212 = vmatpush.xpose.msra.mxu0 0.0
        %1213 = vmatpush.xpose.msra.mxu0 0.0
        %1214 = vmatpush.xpose.msra.mxu0 0.0
        %1215 = vmatpush.xpose.msra.mxu0 0.0
        %1216 = vmatpush.xpose.msra.mxu0 0.0
        %1217 = vmatpush.xpose.msra.mxu0 %v1200
        %1218 = vmatmul.f32.gmra.mxu0 %v1198
        %v1219 = vpop.f32.mrf.mxu0
        %v1220 = vadd.f32 %v1013, %v1219
        %1221 = vdwg.mxu0
        %v1222 = vsel %vm1021, %v1220, -inf
        %1223 = vmax.xlane.f32.xlu0 %v1222
        %v1224 = vpop.xlane.xlu0 %1223
        %v1225 = vsub.f32 %v1220, %v1224
        %v1226 = vmul.f32 %v1225, 1.442695
        %v1227 = vpow.pop %v1226
        %v1228 = vsel %vm1021, %v1227, 0.0
        %1229 = vadd.xlane.f32.xlu0 %v1228
        %v1230 = vpop.xlane.xlu0 %1229
        %v1231 = vrcp.pop %v1230
        %v1232 = vmul.f32 %v1227, %v1231
        %1233 = vrot.lane.b32.xlu0 %v1011, 48
        %v1234 = vpop.permute.xlu0 %1233
        %v1237 = vsel %vm1021, %v1232, 0
        %1239 = vmatpush.msra.mxu0 0.0
        %1240 = vmatpush.msra.mxu0 0.0
        %1241 = vmatpush.msra.mxu0 0.0
        %1242 = vmatpush.msra.mxu0 0.0
        %1243 = vmatpush.msra.mxu0 0.0
        %1244 = vmatpush.msra.mxu0 0.0
        %1245 = vmatpush.msra.mxu0 0.0
        %1246 = vmatpush.msra.mxu0 0.0
        %1247 = vmatpush.msra.mxu0 0.0
        %1248 = vmatpush.msra.mxu0 0.0
        %1249 = vmatpush.msra.mxu0 0.0
        %1250 = vmatpush.msra.mxu0 0.0
        %1251 = vmatpush.msra.mxu0 0.0
        %1252 = vmatpush.msra.mxu0 0.0
        %1253 = vmatpush.msra.mxu0 0.0
        %1254 = vmatpush.msra.mxu0 %v1234
        %1255 = vmatmul.f32.gmra.mxu0 %v1237
        %v1256 = vpop.f32.mrf.mxu0
        %v1257 = vadd.f32 0.0, %v1256
        %1258 = vdwg.mxu0
        %v1260 = vsel %vm1021, %v1257, 0
        %1262 = vmatpush.msra.mxu0 0.0
        %1263 = vmatpush.msra.mxu0 0.0
        %1264 = vmatpush.msra.mxu0 0.0
        %1265 = vmatpush.msra.mxu0 0.0
        %1266 = vmatpush.msra.mxu0 0.0
        %1267 = vmatpush.msra.mxu0 0.0
        %1268 = vmatpush.msra.mxu0 0.0
        %1269 = vmatpush.msra.mxu0 0.0
        %1270 = vmatpush.msra.mxu0 0.0
        %1271 = vmatpush.msra.mxu0 0.0
        %1272 = vmatpush.msra.mxu0 0.0
        %1273 = vmatpush.msra.mxu0 0.0
        %1274 = vmatpush.msra.mxu0 0.0
        %1275 = vmatpush.msra.mxu0 0.0
        %1276 = vmatpush.msra.mxu0 0.0
        %1277 = vmatpush.msra.mxu0 %v1016
        %1278 = vmatmul.f32.gmra.mxu0 %v1260
        %v1279 = vpop.f32.mrf.mxu0
        %v1280 = vadd.f32 0.0, %v1279
        %1281 = vdwg.mxu0
        %v1282 = vadd.f32 %v1192, %v1280
        %1283 = vrot.lane.b32.xlu0 %v1011, 104
        %v1284 = vpop.permute.xlu0 %1283
        %1285 = vrot.lane.b32.xlu0 %v1011, 72
        %v1286 = vpop.permute.xlu0 %1285
        %v1287 = vsel %vm1021, %v1284, 0
        %v1289 = vsel %vm1021, %v1286, 0
        %1291 = vmatpush.xpose.msra.mxu0 0.0
        %1292 = vmatpush.xpose.msra.mxu0 0.0
        %1293 = vmatpush.xpose.msra.mxu0 0.0
        %1294 = vmatpush.xpose.msra.mxu0 0.0
        %1295 = vmatpush.xpose.msra.mxu0 0.0
        %1296 = vmatpush.xpose.msra.mxu0 0.0
        %1297 = vmatpush.xpose.msra.mxu0 0.0
        %1298 = vmatpush.xpose.msra.mxu0 0.0
        %1299 = vmatpush.xpose.msra.mxu0 0.0
        %1300 = vmatpush.xpose.msra.mxu0 0.0
        %1301 = vmatpush.xpose.msra.mxu0 0.0
        %1302 = vmatpush.xpose.msra.mxu0 0.0
        %1303 = vmatpush.xpose.msra.mxu0 0.0
        %1304 = vmatpush.xpose.msra.mxu0 0.0
        %1305 = vmatpush.xpose.msra.mxu0 0.0
        %1306 = vmatpush.xpose.msra.mxu0 %v1289
        %1307 = vmatmul.f32.gmra.mxu0 %v1287
        %v1308 = vpop.f32.mrf.mxu0
        %v1309 = vadd.f32 %v1013, %v1308
        %1310 = vdwg.mxu0
        %v1311 = vsel %vm1021, %v1309, -inf
        %1312 = vmax.xlane.f32.xlu0 %v1311
        %v1313 = vpop.xlane.xlu0 %1312
        %v1314 = vsub.f32 %v1309, %v1313
        %v1315 = vmul.f32 %v1314, 1.442695
        %v1316 = vpow.pop %v1315
        %v1317 = vsel %vm1021, %v1316, 0.0
        %1318 = vadd.xlane.f32.xlu0 %v1317
        %v1319 = vpop.xlane.xlu0 %1318
        %v1320 = vrcp.pop %v1319
        %v1321 = vmul.f32 %v1316, %v1320
        %1322 = vrot.lane.b32.xlu0 %v1011, 40
        %v1323 = vpop.permute.xlu0 %1322
        %v1326 = vsel %vm1021, %v1321, 0
        %1328 = vmatpush.msra.mxu0 0.0
        %1329 = vmatpush.msra.mxu0 0.0
        %1330 = vmatpush.msra.mxu0 0.0
        %1331 = vmatpush.msra.mxu0 0.0
        %1332 = vmatpush.msra.mxu0 0.0
        %1333 = vmatpush.msra.mxu0 0.0
        %1334 = vmatpush.msra.mxu0 0.0
        %1335 = vmatpush.msra.mxu0 0.0
        %1336 = vmatpush.msra.mxu0 0.0
        %1337 = vmatpush.msra.mxu0 0.0
        %1338 = vmatpush.msra.mxu0 0.0
        %1339 = vmatpush.msra.mxu0 0.0
        %1340 = vmatpush.msra.mxu0 0.0
        %1341 = vmatpush.msra.mxu0 0.0
        %1342 = vmatpush.msra.mxu0 0.0
        %1343 = vmatpush.msra.mxu0 %v1323
        %1344 = vmatmul.f32.gmra.mxu0 %v1326
        %v1345 = vpop.f32.mrf.mxu0
        %v1346 = vadd.f32 0.0, %v1345
        %1347 = vdwg.mxu0
        %v1349 = vsel %vm1021, %v1346, 0
        %1351 = vmatpush.msra.mxu0 0.0
        %1352 = vmatpush.msra.mxu0 0.0
        %1353 = vmatpush.msra.mxu0 0.0
        %1354 = vmatpush.msra.mxu0 0.0
        %1355 = vmatpush.msra.mxu0 0.0
        %1356 = vmatpush.msra.mxu0 0.0
        %1357 = vmatpush.msra.mxu0 0.0
        %1358 = vmatpush.msra.mxu0 0.0
        %1359 = vmatpush.msra.mxu0 0.0
        %1360 = vmatpush.msra.mxu0 0.0
        %1361 = vmatpush.msra.mxu0 0.0
        %1362 = vmatpush.msra.mxu0 0.0
        %1363 = vmatpush.msra.mxu0 0.0
        %1364 = vmatpush.msra.mxu0 0.0
        %1365 = vmatpush.msra.mxu0 0.0
        %1366 = vmatpush.msra.mxu0 %v1017
        %1367 = vmatmul.f32.gmra.mxu0 %v1349
        %v1368 = vpop.f32.mrf.mxu0
        %v1369 = vadd.f32 0.0, %v1368
        %1370 = vdwg.mxu0
        %v1371 = vadd.f32 %v1282, %v1369
        %v1372 = vadd.f32 %v918, %v1371
        %v1373 = vld [vmem:[%s9] sm:$0x1]
        %v1375 = vperm.slane %v1373, 0
        %v1377 = vadd.f32 %v1372, %v1375
        %v1378 = vld [vmem:[%s10] sm:$0x1]
        %v1379 = vld [vmem:[%s11] sm:$0x1]
        %v1380 = vsel %vm921, %v1377, 0.0
        %1381 = vadd.xlane.f32.xlu0 %v1380
        %v1382 = vpop.xlane.xlu0 %1381
        %v1383 = vmul.f32 %v1382, %v931
        %v1384 = vsub.f32 %v1377, %v1383
        %v1385 = vmul.f32 %v1384, %v1384
        %v1386 = vsel %vm921, %v1385, 0.0
        %1387 = vadd.xlane.f32.xlu0 %v1386
        %v1388 = vpop.xlane.xlu0 %1387
        %v1389 = vmul.f32 %v1388, %v944
        %v1391 = vperm.slane %v1378, 0
        %v1393 = vmul.f32 %v1391, %v1384
        %v1394 = vrsqrt.pop %v1389
        %v1395 = vmul.f32 %v1394, %v1389
        %v1396 = vmul.f32 %v1395, %v1394
        %v1397 = vmul.f32 0.5, %v1396
        %v1398 = vsub.f32 1.5, %v1397
        %v1399 = vmul.f32 %v1394, %v1398
        %v1400 = vmul.f32 %v1389, %v1399
        %vm1401 = vcmp.eq.f32.partialorder %v1389, inf
        %v1402 = vsel %vm1401, %v1389, %v1400
        %vm1403 = vcmp.eq.f32.partialorder %v1389, 0.0
        %v1404 = vand.u32 %v1389, 2147483648
        %v1405 = vsel %vm1403, %v1404, %v1402
        %v1406 = vadd.f32 %v1405, 1e-06
        %v1407 = vrcp.pop %v1406
        %v1408 = vmul.f32 %v1406, %v1407
        %v1409 = vsub.f32 1.0, %v1408
        %v1410 = vmul.f32 %v1407, %v1409
        %v1411 = vadd.f32 %v1407, %v1410
        %vm1412 = vweird.f32 %v1406
        %vm1413 = vweird.f32 %v1407
        %vm1414 = vmor %vm1412, %vm1413
        %v1415 = vsel %vm1414, %v1407, %v1411
        %v1416 = vand.u32 2147483647, %v1406
        %vm1417 = vcmp.eq.f32.partialorder %v1416, 8.507059e+37
        %v1418 = vand.u32 %v1406, 2147483648
        %v1419 = vor.u32 1.1754944e-38, %v1418
        %v1420 = vsel %vm1417, %v1419, %v1415
        %v1421 = vmul.f32 %v1393, %v1420
        %v1423 = vperm.slane %v1379, 0
        %v1425 = vadd.f32 %v1421, %v1423
        %v1426 = vld [vmem:[%s12] sm:$0xff]
        %v1427 = vld [vmem:[%s12 + $0x8] sm:$0xff]
        %v1428 = vld [vmem:[%s12 + $0x10] sm:$0xff]
        %v1429 = vld [vmem:[%s12 + $0x18] sm:$0xff]
        %v1430 = vld [vmem:[%s13] sm:$0x1]
        %v1432 = vperm.slane %v1430, 0
        %v1435 = vsel %vm921, %v1425, 0
        %1437 = vmatpush.msra.mxu0 0.0
        %1438 = vmatpush.msra.mxu0 0.0
        %1439 = vmatpush.msra.mxu0 0.0
        %1440 = vmatpush.msra.mxu0 0.0
        %1441 = vmatpush.msra.mxu0 0.0
        %1442 = vmatpush.msra.mxu0 0.0
        %1443 = vmatpush.msra.mxu0 0.0
        %1444 = vmatpush.msra.mxu0 0.0
        %1445 = vmatpush.msra.mxu0 0.0
        %1446 = vmatpush.msra.mxu0 0.0
        %1447 = vmatpush.msra.mxu0 0.0
        %1448 = vmatpush.msra.mxu0 0.0
        %1449 = vmatpush.msra.mxu0 %v1429
        %1450 = vmatpush.msra.mxu0 %v1428
        %1451 = vmatpush.msra.mxu0 %v1427
        %1452 = vmatpush.msra.mxu0 %v1426
        %1453 = vmatmul.f32.gmra.mxu0 %v1435
        %v1454 = vpop.f32.mrf.mxu0
        %v1455 = vadd.f32 %v1432, %v1454
        %1456 = vdwg.mxu0
        %v1457 = vld [vmem:[%s802] sm:$0xff]
        %v1458 = vld [vmem:[#allocation10] sm:$0xff]
        %v1459 = vld [vmem:[#allocation10 + $0x8] sm:$0xff]
        %v1460 = vld [vmem:[#allocation10 + $0x10] sm:$0xff]
        %v1461 = vld [vmem:[#allocation10 + $0x18] sm:$0xff]
        %v1462 = vld [vmem:[%s15] sm:$0x1]
        %v1464 = vperm.slane %v1462, 0
        %v1467 = vsel %vm921, %v1457, 0
        %1469 = vmatpush.msra.mxu0 0.0
        %1470 = vmatpush.msra.mxu0 0.0
        %1471 = vmatpush.msra.mxu0 0.0
        %1472 = vmatpush.msra.mxu0 0.0
        %1473 = vmatpush.msra.mxu0 0.0
        %1474 = vmatpush.msra.mxu0 0.0
        %1475 = vmatpush.msra.mxu0 0.0
        %1476 = vmatpush.msra.mxu0 0.0
        %1477 = vmatpush.msra.mxu0 0.0
        %1478 = vmatpush.msra.mxu0 0.0
        %1479 = vmatpush.msra.mxu0 0.0
        %1480 = vmatpush.msra.mxu0 0.0
        %1481 = vmatpush.msra.mxu0 %v1461
        %1482 = vmatpush.msra.mxu0 %v1460
        %1483 = vmatpush.msra.mxu0 %v1459
        %1484 = vmatpush.msra.mxu0 %v1458
        %1485 = vmatmul.f32.gmra.mxu0 %v1467
        %v1486 = vpop.f32.mrf.mxu0
        %v1487 = vadd.f32 %v1464, %v1486
        %1488 = vdwg.mxu0
        %v1489 = vld [vmem:[%s822] sm:$0xff]
        %v1490 = vld [vmem:[#allocation11] sm:$0xff]
        %v1491 = vld [vmem:[#allocation11 + $0x8] sm:$0xff]
        %v1492 = vld [vmem:[#allocation11 + $0x10] sm:$0xff]
        %v1493 = vld [vmem:[#allocation11 + $0x18] sm:$0xff]
        %v1495 = vsel %vm1021, %v1455, 0
        %v1498 = vsel %vm1021, %v1487, 0
        %1500 = vmatpush.xpose.msra.mxu0 0.0
        %1501 = vmatpush.xpose.msra.mxu0 0.0
        %1502 = vmatpush.xpose.msra.mxu0 0.0
        %1503 = vmatpush.xpose.msra.mxu0 0.0
        %1504 = vmatpush.xpose.msra.mxu0 0.0
        %1505 = vmatpush.xpose.msra.mxu0 0.0
        %1506 = vmatpush.xpose.msra.mxu0 0.0
        %1507 = vmatpush.xpose.msra.mxu0 0.0
        %1508 = vmatpush.xpose.msra.mxu0 0.0
        %1509 = vmatpush.xpose.msra.mxu0 0.0
        %1510 = vmatpush.xpose.msra.mxu0 0.0
        %1511 = vmatpush.xpose.msra.mxu0 0.0
        %1512 = vmatpush.xpose.msra.mxu0 0.0
        %1513 = vmatpush.xpose.msra.mxu0 0.0
        %1514 = vmatpush.xpose.msra.mxu0 0.0
        %1515 = vmatpush.xpose.msra.mxu0 %v1498
        %1516 = vmatmul.f32.gmra.mxu0 %v1495
        %v1517 = vpop.f32.mrf.mxu0
        %v1518 = vadd.f32 %v1489, %v1517
        %1519 = vdwg.mxu0
        %v1520 = vsel %vm1021, %v1518, -inf
        %1521 = vmax.xlane.f32.xlu0 %v1520
        %v1522 = vpop.xlane.xlu0 %1521
        %v1523 = vsub.f32 %v1518, %v1522
        %v1524 = vmul.f32 %v1523, 1.442695
        %v1525 = vpow.pop %v1524
        %v1526 = vsel %vm1021, %v1525, 0.0
        %1527 = vadd.xlane.f32.xlu0 %v1526
        %v1528 = vpop.xlane.xlu0 %1527
        %v1529 = vrcp.pop %v1528
        %v1530 = vmul.f32 %v1525, %v1529
        %1531 = vrot.lane.b32.xlu0 %v1487, 96
        %v1532 = vpop.permute.xlu0 %1531
        %v1535 = vsel %vm1021, %v1530, 0
        %1537 = vmatpush.msra.mxu0 0.0
        %1538 = vmatpush.msra.mxu0 0.0
        %1539 = vmatpush.msra.mxu0 0.0
        %1540 = vmatpush.msra.mxu0 0.0
        %1541 = vmatpush.msra.mxu0 0.0
        %1542 = vmatpush.msra.mxu0 0.0
        %1543 = vmatpush.msra.mxu0 0.0
        %1544 = vmatpush.msra.mxu0 0.0
        %1545 = vmatpush.msra.mxu0 0.0
        %1546 = vmatpush.msra.mxu0 0.0
        %1547 = vmatpush.msra.mxu0 0.0
        %1548 = vmatpush.msra.mxu0 0.0
        %1549 = vmatpush.msra.mxu0 0.0
        %1550 = vmatpush.msra.mxu0 0.0
        %1551 = vmatpush.msra.mxu0 0.0
        %1552 = vmatpush.msra.mxu0 %v1532
        %1553 = vmatmul.f32.gmra.mxu0 %v1535
        %v1554 = vpop.f32.mrf.mxu0
        %v1555 = vadd.f32 0.0, %v1554
        %1556 = vdwg.mxu0
        %1557 = vrot.lane.b32.xlu0 %v1455, 120
        %v1558 = vpop.permute.xlu0 %1557
        %1559 = vrot.lane.b32.xlu0 %v1487, 120
        %v1560 = vpop.permute.xlu0 %1559
        %v1561 = vsel %vm1021, %v1558, 0
        %v1563 = vsel %vm1021, %v1560, 0
        %1565 = vmatpush.xpose.msra.mxu0 0.0
        %1566 = vmatpush.xpose.msra.mxu0 0.0
        %1567 = vmatpush.xpose.msra.mxu0 0.0
        %1568 = vmatpush.xpose.msra.mxu0 0.0
        %1569 = vmatpush.xpose.msra.mxu0 0.0
        %1570 = vmatpush.xpose.msra.mxu0 0.0
        %1571 = vmatpush.xpose.msra.mxu0 0.0
        %1572 = vmatpush.xpose.msra.mxu0 0.0
        %1573 = vmatpush.xpose.msra.mxu0 0.0
        %1574 = vmatpush.xpose.msra.mxu0 0.0
        %1575 = vmatpush.xpose.msra.mxu0 0.0
        %1576 = vmatpush.xpose.msra.mxu0 0.0
        %1577 = vmatpush.xpose.msra.mxu0 0.0
        %1578 = vmatpush.xpose.msra.mxu0 0.0
        %1579 = vmatpush.xpose.msra.mxu0 0.0
        %1580 = vmatpush.xpose.msra.mxu0 %v1563
        %1581 = vmatmul.f32.gmra.mxu0 %v1561
        %v1582 = vpop.f32.mrf.mxu0
        %v1583 = vadd.f32 %v1489, %v1582
        %1584 = vdwg.mxu0
        %v1585 = vsel %vm1021, %v1583, -inf
        %1586 = vmax.xlane.f32.xlu0 %v1585
        %v1587 = vpop.xlane.xlu0 %1586
        %v1588 = vsub.f32 %v1583, %v1587
        %v1589 = vmul.f32 %v1588, 1.442695
        %v1590 = vpow.pop %v1589
        %v1591 = vsel %vm1021, %v1590, 0.0
        %1592 = vadd.xlane.f32.xlu0 %v1591
        %v1593 = vpop.xlane.xlu0 %1592
        %v1594 = vrcp.pop %v1593
        %v1595 = vmul.f32 %v1590, %v1594
        %1596 = vrot.lane.b32.xlu0 %v1487, 88
        %v1597 = vpop.permute.xlu0 %1596
        %v1600 = vsel %vm1021, %v1595, 0
        %1602 = vmatpush.msra.mxu0 0.0
        %1603 = vmatpush.msra.mxu0 0.0
        %1604 = vmatpush.msra.mxu0 0.0
        %1605 = vmatpush.msra.mxu0 0.0
        %1606 = vmatpush.msra.mxu0 0.0
        %1607 = vmatpush.msra.mxu0 0.0
        %1608 = vmatpush.msra.mxu0 0.0
        %1609 = vmatpush.msra.mxu0 0.0
        %1610 = vmatpush.msra.mxu0 0.0
        %1611 = vmatpush.msra.mxu0 0.0
        %1612 = vmatpush.msra.mxu0 0.0
        %1613 = vmatpush.msra.mxu0 0.0
        %1614 = vmatpush.msra.mxu0 0.0
        %1615 = vmatpush.msra.mxu0 0.0
        %1616 = vmatpush.msra.mxu0 0.0
        %1617 = vmatpush.msra.mxu0 %v1597
        %1618 = vmatmul.f32.gmra.mxu0 %v1600
        %v1619 = vpop.f32.mrf.mxu0
        %v1620 = vadd.f32 0.0, %v1619
        %1621 = vdwg.mxu0
        %v1623 = vsel %vm1021, %v1620, 0
        %1625 = vmatpush.msra.mxu0 0.0
        %1626 = vmatpush.msra.mxu0 0.0
        %1627 = vmatpush.msra.mxu0 0.0
        %1628 = vmatpush.msra.mxu0 0.0
        %1629 = vmatpush.msra.mxu0 0.0
        %1630 = vmatpush.msra.mxu0 0.0
        %1631 = vmatpush.msra.mxu0 0.0
        %1632 = vmatpush.msra.mxu0 0.0
        %1633 = vmatpush.msra.mxu0 0.0
        %1634 = vmatpush.msra.mxu0 0.0
        %1635 = vmatpush.msra.mxu0 0.0
        %1636 = vmatpush.msra.mxu0 0.0
        %1637 = vmatpush.msra.mxu0 0.0
        %1638 = vmatpush.msra.mxu0 0.0
        %1639 = vmatpush.msra.mxu0 0.0
        %1640 = vmatpush.msra.mxu0 %v1491
        %1641 = vmatmul.f32.gmra.mxu0 %v1623
        %v1642 = vpop.f32.mrf.mxu0
        %v1643 = vadd.f32 0.0, %v1642
        %1644 = vdwg.mxu0
        %v1646 = vsel %vm1021, %v1555, 0
        %1648 = vmatpush.msra.mxu0 0.0
        %1649 = vmatpush.msra.mxu0 0.0
        %1650 = vmatpush.msra.mxu0 0.0
        %1651 = vmatpush.msra.mxu0 0.0
        %1652 = vmatpush.msra.mxu0 0.0
        %1653 = vmatpush.msra.mxu0 0.0
        %1654 = vmatpush.msra.mxu0 0.0
        %1655 = vmatpush.msra.mxu0 0.0
        %1656 = vmatpush.msra.mxu0 0.0
        %1657 = vmatpush.msra.mxu0 0.0
        %1658 = vmatpush.msra.mxu0 0.0
        %1659 = vmatpush.msra.mxu0 0.0
        %1660 = vmatpush.msra.mxu0 0.0
        %1661 = vmatpush.msra.mxu0 0.0
        %1662 = vmatpush.msra.mxu0 0.0
        %1663 = vmatpush.msra.mxu0 %v1490
        %1664 = vmatmul.f32.gmra.mxu0 %v1646
        %v1665 = vpop.f32.mrf.mxu0
        %v1666 = vadd.f32 %v1643, %v1665
        %1667 = vdwg.mxu0
        %1668 = vrot.lane.b32.xlu0 %v1455, 112
        %v1669 = vpop.permute.xlu0 %1668
        %1670 = vrot.lane.b32.xlu0 %v1487, 112
        %v1671 = vpop.permute.xlu0 %1670
        %v1672 = vsel %vm1021, %v1669, 0
        %v1674 = vsel %vm1021, %v1671, 0
        %1676 = vmatpush.xpose.msra.mxu0 0.0
        %1677 = vmatpush.xpose.msra.mxu0 0.0
        %1678 = vmatpush.xpose.msra.mxu0 0.0
        %1679 = vmatpush.xpose.msra.mxu0 0.0
        %1680 = vmatpush.xpose.msra.mxu0 0.0
        %1681 = vmatpush.xpose.msra.mxu0 0.0
        %1682 = vmatpush.xpose.msra.mxu0 0.0
        %1683 = vmatpush.xpose.msra.mxu0 0.0
        %1684 = vmatpush.xpose.msra.mxu0 0.0
        %1685 = vmatpush.xpose.msra.mxu0 0.0
        %1686 = vmatpush.xpose.msra.mxu0 0.0
        %1687 = vmatpush.xpose.msra.mxu0 0.0
        %1688 = vmatpush.xpose.msra.mxu0 0.0
        %1689 = vmatpush.xpose.msra.mxu0 0.0
        %1690 = vmatpush.xpose.msra.mxu0 0.0
        %1691 = vmatpush.xpose.msra.mxu0 %v1674
        %1692 = vmatmul.f32.gmra.mxu0 %v1672
        %v1693 = vpop.f32.mrf.mxu0
        %v1694 = vadd.f32 %v1489, %v1693
        %1695 = vdwg.mxu0
        %v1696 = vsel %vm1021, %v1694, -inf
        %1697 = vmax.xlane.f32.xlu0 %v1696
        %v1698 = vpop.xlane.xlu0 %1697
        %v1699 = vsub.f32 %v1694, %v1698
        %v1700 = vmul.f32 %v1699, 1.442695
        %v1701 = vpow.pop %v1700
        %v1702 = vsel %vm1021, %v1701, 0.0
        %1703 = vadd.xlane.f32.xlu0 %v1702
        %v1704 = vpop.xlane.xlu0 %1703
        %v1705 = vrcp.pop %v1704
        %v1706 = vmul.f32 %v1701, %v1705
        %1707 = vrot.lane.b32.xlu0 %v1487, 80
        %v1708 = vpop.permute.xlu0 %1707
        %v1711 = vsel %vm1021, %v1706, 0
        %1713 = vmatpush.msra.mxu0 0.0
        %1714 = vmatpush.msra.mxu0 0.0
        %1715 = vmatpush.msra.mxu0 0.0
        %1716 = vmatpush.msra.mxu0 0.0
        %1717 = vmatpush.msra.mxu0 0.0
        %1718 = vmatpush.msra.mxu0 0.0
        %1719 = vmatpush.msra.mxu0 0.0
        %1720 = vmatpush.msra.mxu0 0.0
        %1721 = vmatpush.msra.mxu0 0.0
        %1722 = vmatpush.msra.mxu0 0.0
        %1723 = vmatpush.msra.mxu0 0.0
        %1724 = vmatpush.msra.mxu0 0.0
        %1725 = vmatpush.msra.mxu0 0.0
        %1726 = vmatpush.msra.mxu0 0.0
        %1727 = vmatpush.msra.mxu0 0.0
        %1728 = vmatpush.msra.mxu0 %v1708
        %1729 = vmatmul.f32.gmra.mxu0 %v1711
        %v1730 = vpop.f32.mrf.mxu0
        %v1731 = vadd.f32 0.0, %v1730
        %1732 = vdwg.mxu0
        %v1734 = vsel %vm1021, %v1731, 0
        %1736 = vmatpush.msra.mxu0 0.0
        %1737 = vmatpush.msra.mxu0 0.0
        %1738 = vmatpush.msra.mxu0 0.0
        %1739 = vmatpush.msra.mxu0 0.0
        %1740 = vmatpush.msra.mxu0 0.0
        %1741 = vmatpush.msra.mxu0 0.0
        %1742 = vmatpush.msra.mxu0 0.0
        %1743 = vmatpush.msra.mxu0 0.0
        %1744 = vmatpush.msra.mxu0 0.0
        %1745 = vmatpush.msra.mxu0 0.0
        %1746 = vmatpush.msra.mxu0 0.0
        %1747 = vmatpush.msra.mxu0 0.0
        %1748 = vmatpush.msra.mxu0 0.0
        %1749 = vmatpush.msra.mxu0 0.0
        %1750 = vmatpush.msra.mxu0 0.0
        %1751 = vmatpush.msra.mxu0 %v1492
        %1752 = vmatmul.f32.gmra.mxu0 %v1734
        %v1753 = vpop.f32.mrf.mxu0
        %v1754 = vadd.f32 0.0, %v1753
        %1755 = vdwg.mxu0
        %v1756 = vadd.f32 %v1666, %v1754
        %1757 = vrot.lane.b32.xlu0 %v1455, 104
        %v1758 = vpop.permute.xlu0 %1757
        %1759 = vrot.lane.b32.xlu0 %v1487, 104
        %v1760 = vpop.permute.xlu0 %1759
        %v1761 = vsel %vm1021, %v1758, 0
        %v1763 = vsel %vm1021, %v1760, 0
        %1765 = vmatpush.xpose.msra.mxu0 0.0
        %1766 = vmatpush.xpose.msra.mxu0 0.0
        %1767 = vmatpush.xpose.msra.mxu0 0.0
        %1768 = vmatpush.xpose.msra.mxu0 0.0
        %1769 = vmatpush.xpose.msra.mxu0 0.0
        %1770 = vmatpush.xpose.msra.mxu0 0.0
        %1771 = vmatpush.xpose.msra.mxu0 0.0
        %1772 = vmatpush.xpose.msra.mxu0 0.0
        %1773 = vmatpush.xpose.msra.mxu0 0.0
        %1774 = vmatpush.xpose.msra.mxu0 0.0
        %1775 = vmatpush.xpose.msra.mxu0 0.0
        %1776 = vmatpush.xpose.msra.mxu0 0.0
        %1777 = vmatpush.xpose.msra.mxu0 0.0
        %1778 = vmatpush.xpose.msra.mxu0 0.0
        %1779 = vmatpush.xpose.msra.mxu0 0.0
        %1780 = vmatpush.xpose.msra.mxu0 %v1763
        %1781 = vmatmul.f32.gmra.mxu0 %v1761
        %v1782 = vpop.f32.mrf.mxu0
        %v1783 = vadd.f32 %v1489, %v1782
        %1784 = vdwg.mxu0
        %v1785 = vsel %vm1021, %v1783, -inf
        %1786 = vmax.xlane.f32.xlu0 %v1785
        %v1787 = vpop.xlane.xlu0 %1786
        %v1788 = vsub.f32 %v1783, %v1787
        %v1789 = vmul.f32 %v1788, 1.442695
        %v1790 = vpow.pop %v1789
        %v1791 = vsel %vm1021, %v1790, 0.0
        %1792 = vadd.xlane.f32.xlu0 %v1791
        %v1793 = vpop.xlane.xlu0 %1792
        %v1794 = vrcp.pop %v1793
        %v1795 = vmul.f32 %v1790, %v1794
        %1796 = vrot.lane.b32.xlu0 %v1487, 72
        %v1797 = vpop.permute.xlu0 %1796
        %v1800 = vsel %vm1021, %v1795, 0
        %1802 = vmatpush.msra.mxu0 0.0
        %1803 = vmatpush.msra.mxu0 0.0
        %1804 = vmatpush.msra.mxu0 0.0
        %1805 = vmatpush.msra.mxu0 0.0
        %1806 = vmatpush.msra.mxu0 0.0
        %1807 = vmatpush.msra.mxu0 0.0
        %1808 = vmatpush.msra.mxu0 0.0
        %1809 = vmatpush.msra.mxu0 0.0
        %1810 = vmatpush.msra.mxu0 0.0
        %1811 = vmatpush.msra.mxu0 0.0
        %1812 = vmatpush.msra.mxu0 0.0
        %1813 = vmatpush.msra.mxu0 0.0
        %1814 = vmatpush.msra.mxu0 0.0
        %1815 = vmatpush.msra.mxu0 0.0
        %1816 = vmatpush.msra.mxu0 0.0
        %1817 = vmatpush.msra.mxu0 %v1797
        %1818 = vmatmul.f32.gmra.mxu0 %v1800
        %v1819 = vpop.f32.mrf.mxu0
        %v1820 = vadd.f32 0.0, %v1819
        %1821 = vdwg.mxu0
        %v1823 = vsel %vm1021, %v1820, 0
        %1825 = vmatpush.msra.mxu0 0.0
        %1826 = vmatpush.msra.mxu0 0.0
        %1827 = vmatpush.msra.mxu0 0.0
        %1828 = vmatpush.msra.mxu0 0.0
        %1829 = vmatpush.msra.mxu0 0.0
        %1830 = vmatpush.msra.mxu0 0.0
        %1831 = vmatpush.msra.mxu0 0.0
        %1832 = vmatpush.msra.mxu0 0.0
        %1833 = vmatpush.msra.mxu0 0.0
        %1834 = vmatpush.msra.mxu0 0.0
        %1835 = vmatpush.msra.mxu0 0.0
        %1836 = vmatpush.msra.mxu0 0.0
        %1837 = vmatpush.msra.mxu0 0.0
        %1838 = vmatpush.msra.mxu0 0.0
        %1839 = vmatpush.msra.mxu0 0.0
        %1840 = vmatpush.msra.mxu0 %v1493
        %1841 = vmatmul.f32.gmra.mxu0 %v1823
        %v1842 = vpop.f32.mrf.mxu0
        %v1843 = vadd.f32 0.0, %v1842
        %1844 = vdwg.mxu0
        %v1845 = vadd.f32 %v1756, %v1843
        %v1846 = vadd.f32 %v1377, %v1845
        %v1847 = vld [vmem:[%s17] sm:$0x1]
        %v1849 = vperm.slane %v1847, 0
        %v1851 = vadd.f32 %v1846, %v1849
        %v1852 = vld [vmem:[%s18] sm:$0x1]
        %v1853 = vld [vmem:[%s19] sm:$0x1]
        %v1854 = vsel %vm921, %v1851, 0.0
        %1855 = vadd.xlane.f32.xlu0 %v1854
        %v1856 = vpop.xlane.xlu0 %1855
        %v1857 = vmul.f32 %v1856, %v931
        %v1858 = vsub.f32 %v1851, %v1857
        %v1859 = vmul.f32 %v1858, %v1858
        %v1860 = vsel %vm921, %v1859, 0.0
        %1861 = vadd.xlane.f32.xlu0 %v1860
        %v1862 = vpop.xlane.xlu0 %1861
        %v1863 = vmul.f32 %v1862, %v944
        %v1865 = vperm.slane %v1852, 0
        %v1867 = vmul.f32 %v1865, %v1858
        %v1868 = vrsqrt.pop %v1863
        %v1869 = vmul.f32 %v1868, %v1863
        %v1870 = vmul.f32 %v1869, %v1868
        %v1871 = vmul.f32 0.5, %v1870
        %v1872 = vsub.f32 1.5, %v1871
        %v1873 = vmul.f32 %v1868, %v1872
        %v1874 = vmul.f32 %v1863, %v1873
        %vm1875 = vcmp.eq.f32.partialorder %v1863, inf
        %v1876 = vsel %vm1875, %v1863, %v1874
        %vm1877 = vcmp.eq.f32.partialorder %v1863, 0.0
        %v1878 = vand.u32 %v1863, 2147483648
        %v1879 = vsel %vm1877, %v1878, %v1876
        %v1880 = vadd.f32 %v1879, 1e-06
        %v1881 = vrcp.pop %v1880
        %v1882 = vmul.f32 %v1880, %v1881
        %v1883 = vsub.f32 1.0, %v1882
        %v1884 = vmul.f32 %v1881, %v1883
        %v1885 = vadd.f32 %v1881, %v1884
        %vm1886 = vweird.f32 %v1880
        %vm1887 = vweird.f32 %v1881
        %vm1888 = vmor %vm1886, %vm1887
        %v1889 = vsel %vm1888, %v1881, %v1885
        %v1890 = vand.u32 2147483647, %v1880
        %vm1891 = vcmp.eq.f32.partialorder %v1890, 8.507059e+37
        %v1892 = vand.u32 %v1880, 2147483648
        %v1893 = vor.u32 1.1754944e-38, %v1892
        %v1894 = vsel %vm1891, %v1893, %v1889
        %v1895 = vmul.f32 %v1867, %v1894
        %v1897 = vperm.slane %v1853, 0
        %v1899 = vadd.f32 %v1895, %v1897
        %v1900 = vld [vmem:[#allocation13] sm:$0xff]
        %v1901 = vld [vmem:[#allocation13 + $0x8] sm:$0xff]
        %v1902 = vld [vmem:[#allocation13 + $0x10] sm:$0xff]
        %v1903 = vld [vmem:[#allocation13 + $0x18] sm:$0xff]
        %v1904 = vld [vmem:[%s21] sm:$0x1]
        %v1906 = vperm.slane %v1904, 0
        %v1909 = vsel %vm921, %v1899, 0
        %1911 = vmatpush.msra.mxu0 0.0
        %1912 = vmatpush.msra.mxu0 0.0
        %1913 = vmatpush.msra.mxu0 0.0
        %1914 = vmatpush.msra.mxu0 0.0
        %1915 = vmatpush.msra.mxu0 0.0
        %1916 = vmatpush.msra.mxu0 0.0
        %1917 = vmatpush.msra.mxu0 0.0
        %1918 = vmatpush.msra.mxu0 0.0
        %1919 = vmatpush.msra.mxu0 0.0
        %1920 = vmatpush.msra.mxu0 0.0
        %1921 = vmatpush.msra.mxu0 0.0
        %1922 = vmatpush.msra.mxu0 0.0
        %1923 = vmatpush.msra.mxu0 %v1903
        %1924 = vmatpush.msra.mxu0 %v1902
        %1925 = vmatpush.msra.mxu0 %v1901
        %1926 = vmatpush.msra.mxu0 %v1900
        %1927 = vmatmul.f32.gmra.mxu0 %v1909
        %v1928 = vpop.f32.mrf.mxu0
        %v1929 = vadd.f32 %v1906, %v1928
        %1930 = vdwg.mxu0
        %v1931 = vmax.f32 %v1929, 0.0
        %v1932 = vld [vmem:[%s22] sm:$0xff]
        %v1933 = vld [vmem:[%s22 + $0x8] sm:$0xff]
        %v1934 = vld [vmem:[%s22 + $0x10] sm:$0xff]
        %v1935 = vld [vmem:[%s22 + $0x18] sm:$0xff]
        %v1936 = vld [vmem:[%s22 + $0x20] sm:$0xff]
        %v1937 = vld [vmem:[%s22 + $0x28] sm:$0xff]
        %v1938 = vld [vmem:[%s22 + $0x30] sm:$0xff]
        %v1939 = vld [vmem:[%s22 + $0x38] sm:$0xff]
        %v1940 = vld [vmem:[%s23] sm:$0x1]
        %v1942 = vperm.slane %v1940, 0
        %vm1944 = vcmask 523264
        %v1946 = vsel %vm1944, %v1931, 0
        %1948 = vmatpush.msra.mxu0 0.0
        %1949 = vmatpush.msra.mxu0 0.0
        %1950 = vmatpush.msra.mxu0 0.0
        %1951 = vmatpush.msra.mxu0 0.0
        %1952 = vmatpush.msra.mxu0 0.0
        %1953 = vmatpush.msra.mxu0 0.0
        %1954 = vmatpush.msra.mxu0 0.0
        %1955 = vmatpush.msra.mxu0 0.0
        %1956 = vmatpush.msra.mxu0 %v1939
        %1957 = vmatpush.msra.mxu0 %v1938
        %1958 = vmatpush.msra.mxu0 %v1937
        %1959 = vmatpush.msra.mxu0 %v1936
        %1960 = vmatpush.msra.mxu0 %v1935
        %1961 = vmatpush.msra.mxu0 %v1934
        %1962 = vmatpush.msra.mxu0 %v1933
        %1963 = vmatpush.msra.mxu0 %v1932
        %1964 = vmatmul.f32.gmra.mxu0 %v1946
        %v1965 = vpop.f32.mrf.mxu0
        %v1966 = vadd.f32 %v1942, %v1965
        %1967 = vdwg.mxu0
        %v1968 = vadd.f32 %v1851, %v1966
        %1969 = vst.msk [vmem:[%s917] sm:$0xff] %vm921, %v1968
        %s1970 = sand.u32 %s580, 1
        %s1971 = scalar_lea.sflag [#allocation4], %s1970
        %s1972 = sand.u32 %s580, 1
        %s1973 = smul.addr %s1972, 8
        %s1974 = scalar_lea.vmem [#allocation14], %s1973
        // Predicated region
        $region145: #{tpu_custom_call.1} parent=115 // pred_check
          %p1975 = pneg %p590
        $region146: #{tpu_custom_call.1} parent=115 // pred_check_branch
          %1977 = sbr.rel (%p1975) target = $region148
        $region147: #{tpu_custom_call.1} parent=115 // pred_region
          %1979 = vsyncadd %s1971, 0
          %s1980 = smul.addr %s48, 8
          %s1981 = scalar_lea.hbm %s24, %s1980
          %s1983 = sshll.u32 %s1974, 4
          %s1984 = int_to_ptr.vmem [resolvable:$true] %s1983
          %s1985 = sshll.u32 %s1981, 4
          %s1986 = int_to_ptr.hbm [resolvable:$true] %s1985
          %1988 = dma.vmem_to_hbm [thread:$0]  %s1984, 128, %s1986, %s1971
        $region148: #{tpu_custom_call.1} parent=115 // pred_fallthru
          _
      $region116: #{tpu_custom_call.1} parent=5 // pred_fallthru
        _
      %p1989 = scmp.le.s32.totalorder 2, %s43
      // Predicated region
      $region149: #{tpu_custom_call.1} parent=5 // pred_check
        %p1990 = pneg %p1989
      $region150: #{tpu_custom_call.1} parent=5 // pred_check_branch
        %1992 = sbr.rel (%p1990) target = $region152
      $region151: #{tpu_custom_call.1} parent=5 // pred_region
        %s1993 = ssub.s32 %s43, 2
        // Predicated region
        $region153: #{tpu_custom_call.1} parent=151 // pred_check
          %p1994 = pneg %p596
        $region154: #{tpu_custom_call.1} parent=151 // pred_check_branch
          %1996 = sbr.rel (%p1994) target = $region156
        $region155: #{tpu_custom_call.1} parent=151 // pred_region
          %s1997 = sand.u32 %s581, 1
          %s1998 = scalar_lea.sflag [#allocation4], %s1997
          %s1999 = sand.u32 %s581, 1
          %s2000 = smul.addr %s1999, 8
          %s2001 = scalar_lea.vmem [#allocation14], %s2000
          %2003 = dma.done %s1998, 128
        $region156: #{tpu_custom_call.1} parent=151 // pred_fallthru
          _
      $region152: #{tpu_custom_call.1} parent=5 // pred_fallthru
        _
    $region6: #{tpu_custom_call.1} parent=1 // loop_footer
      %s47 = sadd.s32 1, %s43
    $region7: #{tpu_custom_call.1} parent=1 // loop_footer_branch
      %42 = sbr.rel target = $region3
    $region8: #{tpu_custom_call.1} parent=1 // loop_exit
      _
    %2004 = vsyncpa [#allocation3], 1
    %s2005 = scalar_lea.sflag [#allocation3], 1
    %2006 = vsyncpa %s2005, 1
    %2007 = vsyncpa [#allocation6], 1
    %s2008 = scalar_lea.sflag [#allocation6], 1
    %2009 = vsyncpa %s2008, 1
    %2010 = vsyncpa [#allocation9], 1
    %s2011 = scalar_lea.sflag [#allocation9], 1
    %2012 = vsyncpa %s2011, 1
    %2013 = vsyncpa [#allocation12], 1
    %2014 = vsyncpa [#allocation4], 1
    %s2015 = scalar_lea.sflag [#allocation4], 1
    %2016 = vsyncpa %s2015, 1

</llo_original>
